<compile_context>
chip_gen: v7x
topology: tpu7x:2x2x1
jax: 0.10.0
libtpu: 0.0.40
codegen_flags: <defaults>
</compile_context>

<pallas_src>
import jax
import jax.numpy as jnp
from jax import lax
from jax.experimental import pallas as pl
from jax.experimental.pallas import tpu as pltpu

# ---------------- model hyper-parameters (small, consistent with the module) ----
VOCAB = 20          # vocab_size
PAD_IDX = 0         # padding_idx
MAX_SEQ_LEN = 16    # max_seq_len
D = 32              # embed_dim
N_HEADS = 2         # n_heads
N_BLOCKS = 2        # n_blocks
D_FF = 64           # feed_forward hidden dim
K1, K2 = 3, 1       # feed_forward conv kernel sizes (odd -> 'same' padding)
B, T = 2, 8         # batch, sequence length
DH = D // N_HEADS
LN_EPS = 1e-5
NEG_INF = -1e9      # stand-in for masked_fill(-inf); identical softmax result here
TAB_ROWS = 32       # each embedding table padded to 32 rows
R = B * T           # flattened rows processed as one slab
HR = N_HEADS * R    # head-stacked rows for batched attention

assert D == N_HEADS * DH
assert (T & (T - 1)) == 0 and (R & (R - 1)) == 0, "seq-id math uses shift/mask"
assert VOCAB <= TAB_ROWS and MAX_SEQ_LEN + 1 <= TAB_ROWS
T_SHIFT = T.bit_length() - 1
R_SHIFT = R.bit_length() - 1

# ---- packed-buffer layout (prepared once in pack_params) -----------------------
LANES = 128
MAT_BLOCK_ROWS = 2 * D + K1 * D + D_FF                 # [W_qkv | W_o | W1 | W2]
MAT_ROWS = 2 * TAB_ROWS + N_BLOCKS * MAT_BLOCK_ROWS    # table + per-block weights
VEC_BLOCK_ROWS = 8                                     # bias / LN rows per block
VEC_ROWS = N_BLOCKS * VEC_BLOCK_ROWS


# ------------------------------- helpers ----------------------------------------
def _layernorm(x, g, b):
    mean = jnp.mean(x, axis=-1, keepdims=True)
    var = jnp.mean(jnp.square(x - mean), axis=-1, keepdims=True)
    return (x - mean) * lax.rsqrt(var + LN_EPS) * g + b


# ---------------------------- fused Pallas kernel --------------------------------
def encoder_kernel(tok_ref, keypad_ref, vecs_ref, mats_ref, out_ref):
    bf16 = jnp.bfloat16
    scale = 1.0 / (DH ** 0.5)

    # ----- embedding + positional encoding as ONE one-hot matmul (fused gather) --
    ids = tok_ref[:, 0:1]                                        # (R, 1) int32
    pos = tok_ref[:, 1:2]                                        # (R, 1) int32
    col = lax.broadcasted_iota(jnp.int32, (R, 2 * TAB_ROWS), 1)  # table column ids
    onehot = ((col == ids) | (col == pos + TAB_ROWS)).astype(bf16)   # (R, 64)
    table = mats_ref[0:2 * TAB_ROWS, 0:D]                        # (64, D) bf16
    h = jnp.dot(onehot, table, preferred_element_type=jnp.float32)   # (R, D) f32

    # ----- additive bias for the head-stacked (HR, HR) score matrix --------------
    # row = h_q*R + r_q, col = h_k*R + r_k; mask cross-head, cross-sequence and
    # padded keys in one go. NOTE: quadratic in B*T -- fine here (<8 KiB).
    qi = lax.broadcasted_iota(jnp.int32, (HR, HR), 0)
    ki = lax.broadcasted_iota(jnp.int32, (HR, HR), 1)
    same_head = (qi >> R_SHIFT) == (ki >> R_SHIFT)
    same_seq = ((qi & (R - 1)) >> T_SHIFT) == ((ki & (R - 1)) >> T_SHIFT)
    keypad = keypad_ref[...]                                     # (1, R), 1.0 = pad
    keypad2 = jnp.concatenate([keypad] * N_HEADS, axis=1)        # (1, HR)
    attn_bias = jnp.where(same_head & same_seq & (keypad2 < 0.5),
                          0.0, NEG_INF).astype(jnp.float32)      # (HR, HR)

    # ----- conv edge masks (zero the taps that would cross a sequence boundary) --
    pos_in_seq = lax.broadcasted_iota(jnp.int32, (R, 1), 0) & (T - 1)
    has_prev = pos_in_seq != 0
    has_next = pos_in_seq != T - 1

    vecs = vecs_ref[...]                                         # (VEC_ROWS, 128)

    for blk in range(N_BLOCKS):                                  # static unroll
        mb = 2 * TAB_ROWS + blk * MAT_BLOCK_ROWS
        vb = blk * VEC_BLOCK_ROWS
        w_qkv = mats_ref[mb:mb + D, 0:3 * D]                     # (D, 3D)   bf16
        w_o = mats_ref[mb + D:mb + 2 * D, 0:D]                   # (D, D)    bf16
        w_1 = mats_ref[mb + 2 * D:mb + 2 * D + K1 * D, 0:D_FF]   # (3D, DFF) bf16
        w_2 = mats_ref[mb + 2 * D + K1 * D:mb + MAT_BLOCK_ROWS, 0:D]  # (DFF, D)
        b_qkv = vecs[vb + 0:vb + 1, 0:3 * D]
        b_o = vecs[vb + 1:vb + 2, 0:D]
        ln1_g = vecs[vb + 2:vb + 3, 0:D]
        ln1_b = vecs[vb + 3:vb + 4, 0:D]
        b_1 = vecs[vb + 4:vb + 5, 0:D_FF]
        b_2 = vecs[vb + 5:vb + 6, 0:D]
        ln2_g = vecs[vb + 6:vb + 7, 0:D]
        ln2_b = vecs[vb + 7:vb + 8, 0:D]

        # ----- multi-head self-attention (fused QKV, heads batched on sublanes) --
        qkv = jnp.dot(h.astype(bf16), w_qkv,
                      preferred_element_type=jnp.float32) + b_qkv        # (R, 3D)
        q = jnp.concatenate(
            [qkv[:, hd * DH:(hd + 1) * DH] for hd in range(N_HEADS)], axis=0)
        k = jnp.concatenate(
            [qkv[:, (N_HEADS + hd) * DH:(N_HEADS + hd + 1) * DH]
             for hd in range(N_HEADS)], axis=0)
        v = jnp.concatenate(
            [qkv[:, (2 * N_HEADS + hd) * DH:(2 * N_HEADS + hd + 1) * DH]
             for hd in range(N_HEADS)], axis=0)                          # (HR, DH)
        s = lax.dot_general(q.astype(bf16), k.astype(bf16),
                            (((1,), (1,)), ((), ())),
                            preferred_element_type=jnp.float32) * scale + attn_bias
        s = s - jnp.max(s, axis=-1, keepdims=True)
        p = jnp.exp(s)
        p = p * pl.reciprocal(jnp.sum(p, axis=-1, keepdims=True), approx=True)
        o = jnp.dot(p.astype(bf16), v.astype(bf16),
                    preferred_element_type=jnp.float32)                  # (HR, DH)
        o_cat = jnp.concatenate(
            [o[hd * R:(hd + 1) * R] for hd in range(N_HEADS)], axis=1)   # (R, D)
        attn = jnp.dot(o_cat.astype(bf16), w_o,
                       preferred_element_type=jnp.float32) + b_o
        h = _layernorm(attn + h, ln1_g, ln1_b)

        # ----- feed-forward: Conv1d(k=3,'same') -> ReLU -> Conv1d(k=1) -----------
        h_prev = jnp.where(has_prev, jnp.roll(h, 1, axis=0), 0.0)   # h[t-1], 0 at seq start
        h_next = jnp.where(has_next, jnp.roll(h, -1, axis=0), 0.0)  # h[t+1], 0 at seq end
        conv_in = jnp.concatenate([h_prev, h, h_next], axis=1).astype(bf16)  # (R, 3D)
        f = jnp.dot(conv_in, w_1, preferred_element_type=jnp.float32) + b_1
        f = jnp.maximum(f, 0.0)
        f = jnp.dot(f.astype(bf16), w_2, preferred_element_type=jnp.float32) + b_2
        h = _layernorm(f + h, ln2_g, ln2_b)

    out_ref[...] = h


# ------------------------------ wrapper ------------------------------------------
def fastspeech_encoder(packed, x_ids, src_pos):
    """x_ids: (B, T) int32 token ids; src_pos: (B, T) int32 positions (0 = pad)."""
    assert x_ids.shape == (B, T) and src_pos.shape == (B, T)
    tok = jnp.stack([x_ids.reshape(R), src_pos.reshape(R)], axis=1).astype(jnp.int32)
    keypad = (x_ids.reshape(1, R) == PAD_IDX).astype(jnp.float32)

    vmem = lambda: pl.BlockSpec(memory_space=pltpu.MemorySpace.VMEM)
    out_flat = pl.pallas_call(
        encoder_kernel,
        out_shape=jax.ShapeDtypeStruct((R, D), jnp.float32),
        in_specs=[vmem(), vmem(), vmem(), vmem()],
        out_specs=vmem(),
    )(tok, keypad, packed["vecs"], packed["mats"])
    return out_flat.reshape(B, T, D)


# --------------------------- parameter init --------------------------------------
def init_params(key):
    keys = jax.random.split(key, 2 + N_BLOCKS)
    emb = 0.02 * jax.random.normal(keys[0], (VOCAB, D), jnp.float32)
    emb = emb.at[PAD_IDX].set(0.0)                       # padding_idx row = 0
    pos = 0.02 * jax.random.normal(keys[1], (MAX_SEQ_LEN + 1, D), jnp.float32)
    pos = pos.at[PAD_IDX].set(0.0)

    blocks = []
    for blk in range(N_BLOCKS):
        sub = jax.random.split(keys[2 + blk], 16)
        blocks.append(dict(
            wq=0.05 * jax.random.normal(sub[0], (D, D), jnp.float32),
            wk=0.05 * jax.random.normal(sub[1], (D, D), jnp.float32),
            wv=0.05 * jax.random.normal(sub[2], (D, D), jnp.float32),
            wo=0.05 * jax.random.normal(sub[3], (D, D), jnp.float32),
            bq=0.02 * jax.random.normal(sub[4], (D,), jnp.float32),
            bk=0.02 * jax.random.normal(sub[5], (D,), jnp.float32),
            bv=0.02 * jax.random.normal(sub[6], (D,), jnp.float32),
            bo=0.02 * jax.random.normal(sub[7], (D,), jnp.float32),
            ln1_g=1.0 + 0.05 * jax.random.normal(sub[8], (D,), jnp.float32),
            ln1_b=0.02 * jax.random.normal(sub[9], (D,), jnp.float32),
            w1=0.05 * jax.random.normal(sub[10], (K1, D, D_FF), jnp.float32),
            b1=0.02 * jax.random.normal(sub[11], (D_FF,), jnp.float32),
            w2=0.05 * jax.random.normal(sub[12], (D_FF, D), jnp.float32),
            b2=0.02 * jax.random.normal(sub[13], (D,), jnp.float32),
            ln2_g=1.0 + 0.05 * jax.random.normal(sub[14], (D,), jnp.float32),
            ln2_b=0.02 * jax.random.normal(sub[15], (D,), jnp.float32),
        ))
    return {"embedding": emb, "pos_encoder": pos, "blocks": blocks}


def pack_params(params):
    """One-time packing of all weights into two lane-padded VMEM slabs (hoisted
    out of the per-call path)."""
    # stacked gather table: rows [0:VOCAB] = embedding, [32:32+17] = pos table
    table = jnp.zeros((2 * TAB_ROWS, D), jnp.float32)
    table = table.at[0:VOCAB].set(params["embedding"])
    table = table.at[TAB_ROWS:TAB_ROWS + MAX_SEQ_LEN + 1].set(params["pos_encoder"])

    mats = jnp.zeros((MAT_ROWS, LANES), jnp.float32)
    mats = mats.at[0:2 * TAB_ROWS, 0:D].set(table)
    vecs = jnp.zeros((VEC_ROWS, LANES), jnp.float32)
    for blk in range(N_BLOCKS):
        pb = params["blocks"][blk]
        mb = 2 * TAB_ROWS + blk * MAT_BLOCK_ROWS
        w_qkv = jnp.concatenate([pb["wq"], pb["wk"], pb["wv"]], axis=1)   # (D, 3D)
        mats = mats.at[mb:mb + D, 0:3 * D].set(w_qkv)
        mats = mats.at[mb + D:mb + 2 * D, 0:D].set(pb["wo"])
        mats = mats.at[mb + 2 * D:mb + 2 * D + K1 * D, 0:D_FF].set(
            pb["w1"].reshape(K1 * D, D_FF))                              # tap-major
        mats = mats.at[mb + 2 * D + K1 * D:mb + MAT_BLOCK_ROWS, 0:D].set(pb["w2"])

        vb = blk * VEC_BLOCK_ROWS
        vecs = vecs.at[vb + 0, 0:3 * D].set(
            jnp.concatenate([pb["bq"], pb["bk"], pb["bv"]]))
        vecs = vecs.at[vb + 1, 0:D].set(pb["bo"])
        vecs = vecs.at[vb + 2, 0:D].set(pb["ln1_g"])
        vecs = vecs.at[vb + 3, 0:D].set(pb["ln1_b"])
        vecs = vecs.at[vb + 4, 0:D_FF].set(pb["b1"])
        vecs = vecs.at[vb + 5, 0:D].set(pb["b2"])
        vecs = vecs.at[vb + 6, 0:D].set(pb["ln2_g"])
        vecs = vecs.at[vb + 7, 0:D].set(pb["ln2_b"])

    return {"mats": mats.astype(jnp.bfloat16),   # bf16 matmul operands
            "vecs": vecs}                        # f32 biases / LN params


# ----------------------- pure-JAX reference (validation) -------------------------
def reference_forward(params, x_ids, src_pos):
    hp = lax.Precision.HIGHEST
    h = (params["embedding"][x_ids] + params["pos_encoder"][src_pos]).astype(jnp.float32)
    keypad = (x_ids == PAD_IDX)                                   # (B, T)
    for blk in range(N_BLOCKS):
        pb = params["blocks"][blk]
        q = jnp.einsum("btd,de->bte", h, pb["wq"], precision=hp) + pb["bq"]
        k = jnp.einsum("btd,de->bte", h, pb["wk"], precision=hp) + pb["bk"]
        v = jnp.einsum("btd,de->bte", h, pb["wv"], precision=hp) + pb["bv"]
        q = q.reshape(B, T, N_HEADS, DH).transpose(0, 2, 1, 3)
        k = k.reshape(B, T, N_HEADS, DH).transpose(0, 2, 1, 3)
        v = v.reshape(B, T, N_HEADS, DH).transpose(0, 2, 1, 3)
        s = jnp.einsum("bhtd,bhsd->bhts", q, k, precision=hp) / (DH ** 0.5)
        s = jnp.where(keypad[:, None, None, :], NEG_INF, s)
        a = jax.nn.softmax(s, axis=-1)
        o = jnp.einsum("bhts,bhsd->bhtd", a, v, precision=hp)
        o = o.transpose(0, 2, 1, 3).reshape(B, T, D)
        attn = jnp.einsum("btd,de->bte", o, pb["wo"], precision=hp) + pb["bo"]
        h = _layernorm(attn + h, pb["ln1_g"], pb["ln1_b"])

        pad_l = (K1 - 1) // 2
        hpad = jnp.pad(h, ((0, 0), (pad_l, K1 - 1 - pad_l), (0, 0)))
        f = pb["b1"]
        for kk in range(K1):
            f = f + jnp.einsum("btd,df->btf", hpad[:, kk:kk + T],
                               pb["w1"][kk], precision=hp)
        f = jnp.maximum(f, 0.0)
        f = jnp.einsum("btf,fd->btd", f, pb["w2"], precision=hp) + pb["b2"]
        h = _layernorm(f + h, pb["ln2_g"], pb["ln2_b"])
    return h


# ---------------------------------- main ------------------------------------------
if __name__ == "__main__":
    key = jax.random.PRNGKey(0)
    k_par, k_ids = jax.random.split(key)

    params = init_params(k_par)
    packed = pack_params(params)        # one-time weight packing (not per call)

    # deterministic inputs: batch 0 full length, batch 1 has 3 padded tokens
    x_ids = jax.random.randint(k_ids, (B, T), 1, VOCAB, dtype=jnp.int32)
    x_ids = x_ids.at[1, 5:].set(PAD_IDX)
    src_pos = jnp.broadcast_to(jnp.arange(1, T + 1, dtype=jnp.int32), (B, T))
    src_pos = jnp.where(x_ids == PAD_IDX, PAD_IDX, src_pos)

    out = jax.block_until_ready(fastspeech_encoder(packed, x_ids, src_pos))

    assert out.shape == (B, T, D), out.shape
    assert bool(jnp.all(jnp.isfinite(out)))

    ref = reference_forward(params, x_ids, src_pos)
    max_err = float(jnp.max(jnp.abs(out - ref)))
    assert bool(jnp.allclose(out, ref, atol=5e-2, rtol=5e-2)), max_err
    print("KERNEL_OK")
</pallas_src>

<mosaic_0001>
module attributes {stable_mosaic.version = 11 : i64} {
  func.func @encoder_kernel(%arg0: memref<16x2xi32, #tpu.memory_space<vmem>>, %arg1: memref<1x16xf32, #tpu.memory_space<vmem>>, %arg2: memref<16x128xf32, #tpu.memory_space<vmem>>, %arg3: memref<512x128xbf16, #tpu.memory_space<vmem>>, %arg4: memref<16x32xf32, #tpu.memory_space<vmem>>) attributes {dimension_semantics = [], scalar_prefetch = 0 : i64, scratch_operands = 0 : i64, tpu.core_type = #tpu.core_type<tc>} {
    %c0 = arith.constant 0 : index
    %c0_0 = arith.constant 0 : index
    %0 = vector.load %arg0[%c0, %c0_0] : memref<16x2xi32, #tpu.memory_space<vmem>>, vector<16x1xi32>
    %c0_1 = arith.constant 0 : index
    %c1 = arith.constant 1 : index
    %1 = vector.load %arg0[%c0_1, %c1] : memref<16x2xi32, #tpu.memory_space<vmem>>, vector<16x1xi32>
    %2 = tpu.iota {dimensions = array<i32: 1>} : vector<16x64xi32>
    %3 = vector.broadcast %0 : vector<16x1xi32> to vector<16x64xi32>
    %4 = arith.cmpi eq, %2, %3 : vector<16x64xi32>
    %c32_i32 = arith.constant 32 : i32
    %5 = vector.broadcast %c32_i32 : i32 to vector<16x1xi32>
    %6 = arith.addi %1, %5 : vector<16x1xi32>
    %7 = vector.broadcast %6 : vector<16x1xi32> to vector<16x64xi32>
    %8 = arith.cmpi eq, %2, %7 : vector<16x64xi32>
    %9 = arith.ori %4, %8 : vector<16x64xi1>
    %10 = arith.extui %9 : vector<16x64xi1> to vector<16x64xi32>
    %11 = arith.sitofp %10 : vector<16x64xi32> to vector<16x64xf32>
    %12 = arith.truncf %11 : vector<16x64xf32> to vector<16x64xbf16>
    %c0_2 = arith.constant 0 : index
    %c0_3 = arith.constant 0 : index
    %13 = vector.load %arg3[%c0_2, %c0_3] : memref<512x128xbf16, #tpu.memory_space<vmem>>, vector<64x32xbf16>
    %cst = arith.constant dense<0.000000e+00> : vector<16x32xf32>
    %14 = tpu.matmul %12, %13, %cst {dimension_numbers = #tpu.dot_dimension_numbers<[1], [0], [0], [1], [0, 0, 1, 1], [], []>} : vector<16x64xbf16>, vector<64x32xbf16>, vector<16x32xf32> -> vector<16x32xf32>
    %15 = tpu.iota {dimensions = array<i32: 0>} : vector<32x32xi32>
    %16 = tpu.iota {dimensions = array<i32: 1>} : vector<32x32xi32>
    %c4_i32 = arith.constant 4 : i32
    %17 = vector.broadcast %c4_i32 : i32 to vector<32x32xi32>
    %18 = arith.shrsi %15, %17 : vector<32x32xi32>
    %c4_i32_4 = arith.constant 4 : i32
    %19 = vector.broadcast %c4_i32_4 : i32 to vector<32x32xi32>
    %20 = arith.shrsi %16, %19 : vector<32x32xi32>
    %21 = arith.cmpi eq, %18, %20 : vector<32x32xi32>
    %c15_i32 = arith.constant 15 : i32
    %22 = vector.broadcast %c15_i32 : i32 to vector<32x32xi32>
    %23 = arith.andi %15, %22 : vector<32x32xi32>
    %c3_i32 = arith.constant 3 : i32
    %24 = vector.broadcast %c3_i32 : i32 to vector<32x32xi32>
    %25 = arith.shrsi %23, %24 : vector<32x32xi32>
    %c15_i32_5 = arith.constant 15 : i32
    %26 = vector.broadcast %c15_i32_5 : i32 to vector<32x32xi32>
    %27 = arith.andi %16, %26 : vector<32x32xi32>
    %c3_i32_6 = arith.constant 3 : i32
    %28 = vector.broadcast %c3_i32_6 : i32 to vector<32x32xi32>
    %29 = arith.shrsi %27, %28 : vector<32x32xi32>
    %30 = arith.cmpi eq, %25, %29 : vector<32x32xi32>
    %c0_7 = arith.constant 0 : index
    %c0_8 = arith.constant 0 : index
    %31 = vector.load %arg1[%c0_7, %c0_8] : memref<1x16xf32, #tpu.memory_space<vmem>>, vector<1x16xf32>
    %32 = tpu.concatenate %31, %31 in 1 : vector<1x16xf32>, vector<1x16xf32> -> vector<1x32xf32>
    %33 = arith.andi %21, %30 : vector<32x32xi1>
    %cst_9 = arith.constant 5.000000e-01 : f32
    %34 = vector.broadcast %cst_9 : f32 to vector<1x32xf32>
    %35 = arith.cmpf olt, %32, %34 : vector<1x32xf32>
    %36 = vector.broadcast %35 : vector<1x32xi1> to vector<32x32xi1>
    %37 = arith.andi %33, %36 : vector<32x32xi1>
    %cst_10 = arith.constant 0.000000e+00 : f32
    %cst_11 = arith.constant -1.000000e+09 : f32
    %38 = vector.broadcast %cst_10 : f32 to vector<32x32xf32>
    %39 = vector.broadcast %cst_11 : f32 to vector<32x32xf32>
    %40 = arith.select %37, %38, %39 : vector<32x32xi1>, vector<32x32xf32>
    %41 = tpu.iota {dimensions = array<i32: 0>} : vector<16x1xi32>
    %c7_i32 = arith.constant 7 : i32
    %42 = vector.broadcast %c7_i32 : i32 to vector<16x1xi32>
    %43 = arith.andi %41, %42 : vector<16x1xi32>
    %c0_i32 = arith.constant 0 : i32
    %44 = vector.broadcast %c0_i32 : i32 to vector<16x1xi32>
    %45 = arith.cmpi ne, %43, %44 : vector<16x1xi32>
    %c7_i32_12 = arith.constant 7 : i32
    %46 = vector.broadcast %c7_i32_12 : i32 to vector<16x1xi32>
    %47 = arith.cmpi ne, %43, %46 : vector<16x1xi32>
    %c0_13 = arith.constant 0 : index
    %c0_14 = arith.constant 0 : index
    %48 = vector.load %arg2[%c0_13, %c0_14] : memref<16x128xf32, #tpu.memory_space<vmem>>, vector<16x128xf32>
    %c64 = arith.constant 64 : index
    %c0_15 = arith.constant 0 : index
    %49 = vector.load %arg3[%c64, %c0_15] : memref<512x128xbf16, #tpu.memory_space<vmem>>, vector<32x96xbf16>
    %c96 = arith.constant 96 : index
    %c0_16 = arith.constant 0 : index
    %50 = vector.load %arg3[%c96, %c0_16] : memref<512x128xbf16, #tpu.memory_space<vmem>>, vector<32x32xbf16>
    %c128 = arith.constant 128 : index
    %c0_17 = arith.constant 0 : index
    %51 = vector.load %arg3[%c128, %c0_17] : memref<512x128xbf16, #tpu.memory_space<vmem>>, vector<96x64xbf16>
    %c224 = arith.constant 224 : index
    %c0_18 = arith.constant 0 : index
    %52 = vector.load %arg3[%c224, %c0_18] : memref<512x128xbf16, #tpu.memory_space<vmem>>, vector<64x32xbf16>
    %53 = vector.extract_strided_slice %48 {offsets = [0, 0], sizes = [1, 96], strides = [1, 1]} : vector<16x128xf32> to vector<1x96xf32>
    %54 = vector.extract_strided_slice %48 {offsets = [1, 0], sizes = [1, 32], strides = [1, 1]} : vector<16x128xf32> to vector<1x32xf32>
    %55 = vector.extract_strided_slice %48 {offsets = [2, 0], sizes = [1, 32], strides = [1, 1]} : vector<16x128xf32> to vector<1x32xf32>
    %56 = vector.extract_strided_slice %48 {offsets = [3, 0], sizes = [1, 32], strides = [1, 1]} : vector<16x128xf32> to vector<1x32xf32>
    %57 = vector.extract_strided_slice %48 {offsets = [4, 0], sizes = [1, 64], strides = [1, 1]} : vector<16x128xf32> to vector<1x64xf32>
    %58 = vector.extract_strided_slice %48 {offsets = [5, 0], sizes = [1, 32], strides = [1, 1]} : vector<16x128xf32> to vector<1x32xf32>
    %59 = vector.extract_strided_slice %48 {offsets = [6, 0], sizes = [1, 32], strides = [1, 1]} : vector<16x128xf32> to vector<1x32xf32>
    %60 = vector.extract_strided_slice %48 {offsets = [7, 0], sizes = [1, 32], strides = [1, 1]} : vector<16x128xf32> to vector<1x32xf32>
    %61 = arith.truncf %14 : vector<16x32xf32> to vector<16x32xbf16>
    %cst_19 = arith.constant dense<0.000000e+00> : vector<16x96xf32>
    %62 = tpu.matmul %61, %49, %cst_19 {dimension_numbers = #tpu.dot_dimension_numbers<[1], [0], [0], [1], [0, 0, 1, 1], [], []>} : vector<16x32xbf16>, vector<32x96xbf16>, vector<16x96xf32> -> vector<16x96xf32>
    %63 = vector.broadcast %53 : vector<1x96xf32> to vector<16x96xf32>
    %64 = arith.addf %62, %63 : vector<16x96xf32>
    %65 = vector.extract_strided_slice %64 {offsets = [0, 0], sizes = [16, 16], strides = [1, 1]} : vector<16x96xf32> to vector<16x16xf32>
    %66 = vector.extract_strided_slice %64 {offsets = [0, 16], sizes = [16, 16], strides = [1, 1]} : vector<16x96xf32> to vector<16x16xf32>
    %67 = tpu.concatenate %65, %66 in 0 : vector<16x16xf32>, vector<16x16xf32> -> vector<32x16xf32>
    %68 = vector.extract_strided_slice %64 {offsets = [0, 32], sizes = [16, 16], strides = [1, 1]} : vector<16x96xf32> to vector<16x16xf32>
    %69 = vector.extract_strided_slice %64 {offsets = [0, 48], sizes = [16, 16], strides = [1, 1]} : vector<16x96xf32> to vector<16x16xf32>
    %70 = tpu.concatenate %68, %69 in 0 : vector<16x16xf32>, vector<16x16xf32> -> vector<32x16xf32>
    %71 = vector.extract_strided_slice %64 {offsets = [0, 64], sizes = [16, 16], strides = [1, 1]} : vector<16x96xf32> to vector<16x16xf32>
    %72 = vector.extract_strided_slice %64 {offsets = [0, 80], sizes = [16, 16], strides = [1, 1]} : vector<16x96xf32> to vector<16x16xf32>
    %73 = tpu.concatenate %71, %72 in 0 : vector<16x16xf32>, vector<16x16xf32> -> vector<32x16xf32>
    %74 = arith.truncf %67 : vector<32x16xf32> to vector<32x16xbf16>
    %75 = arith.truncf %70 : vector<32x16xf32> to vector<32x16xbf16>
    %cst_20 = arith.constant dense<0.000000e+00> : vector<32x32xf32>
    %76 = tpu.matmul %74, %75, %cst_20 {dimension_numbers = #tpu.dot_dimension_numbers<[1], [1], [0], [0], [0, 0, 1, 0], [], []>} : vector<32x16xbf16>, vector<32x16xbf16>, vector<32x32xf32> -> vector<32x32xf32>
    %cst_21 = arith.constant 2.500000e-01 : f32
    %77 = vector.broadcast %cst_21 : f32 to vector<32x32xf32>
    %78 = arith.mulf %76, %77 : vector<32x32xf32>
    %79 = arith.addf %78, %40 : vector<32x32xf32>
    %cst_22 = arith.constant dense<0xFF800000> : vector<32xf32>
    %80 = vector.multi_reduction <maximumf>, %79, %cst_22 [1] : vector<32x32xf32> to vector<32xf32>
    %81 = vector.shape_cast %80 : vector<32xf32> to vector<32x1xf32>
    %82 = vector.broadcast %81 : vector<32x1xf32> to vector<32x32xf32>
    %83 = arith.subf %79, %82 : vector<32x32xf32>
    %84 = math.exp %83 : vector<32x32xf32>
    %cst_23 = arith.constant dense<0.000000e+00> : vector<32xf32>
    %85 = vector.multi_reduction <add>, %84, %cst_23 [1] : vector<32x32xf32> to vector<32xf32>
    %86 = vector.shape_cast %85 : vector<32xf32> to vector<32x1xf32>
    %87 = tpu.reciprocal %86 {approx = true} : vector<32x1xf32> -> vector<32x1xf32>
    %88 = vector.broadcast %87 : vector<32x1xf32> to vector<32x32xf32>
    %89 = arith.mulf %84, %88 : vector<32x32xf32>
    %90 = arith.truncf %89 : vector<32x32xf32> to vector<32x32xbf16>
    %91 = arith.truncf %73 : vector<32x16xf32> to vector<32x16xbf16>
    %cst_24 = arith.constant dense<0.000000e+00> : vector<32x16xf32>
    %92 = tpu.matmul %90, %91, %cst_24 {dimension_numbers = #tpu.dot_dimension_numbers<[1], [0], [0], [1], [0, 0, 1, 1], [], []>} : vector<32x32xbf16>, vector<32x16xbf16>, vector<32x16xf32> -> vector<32x16xf32>
    %93 = vector.extract_strided_slice %92 {offsets = [0, 0], sizes = [16, 16], strides = [1, 1]} : vector<32x16xf32> to vector<16x16xf32>
    %94 = vector.extract_strided_slice %92 {offsets = [16, 0], sizes = [16, 16], strides = [1, 1]} : vector<32x16xf32> to vector<16x16xf32>
    %95 = tpu.concatenate %93, %94 in 1 : vector<16x16xf32>, vector<16x16xf32> -> vector<16x32xf32>
    %96 = arith.truncf %95 : vector<16x32xf32> to vector<16x32xbf16>
    %cst_25 = arith.constant dense<0.000000e+00> : vector<16x32xf32>
    %97 = tpu.matmul %96, %50, %cst_25 {dimension_numbers = #tpu.dot_dimension_numbers<[1], [0], [0], [1], [0, 0, 1, 1], [], []>} : vector<16x32xbf16>, vector<32x32xbf16>, vector<16x32xf32> -> vector<16x32xf32>
    %98 = vector.broadcast %54 : vector<1x32xf32> to vector<16x32xf32>
    %99 = arith.addf %97, %98 : vector<16x32xf32>
    %100 = arith.addf %99, %14 : vector<16x32xf32>
    %cst_26 = arith.constant dense<0.000000e+00> : vector<16xf32>
    %101 = vector.multi_reduction <add>, %100, %cst_26 [1] : vector<16x32xf32> to vector<16xf32>
    %102 = vector.shape_cast %101 : vector<16xf32> to vector<16x1xf32>
    %cst_27 = arith.constant 3.200000e+01 : f32
    %103 = vector.broadcast %cst_27 : f32 to vector<16x1xf32>
    %104 = arith.divf %102, %103 : vector<16x1xf32>
    %105 = vector.broadcast %104 : vector<16x1xf32> to vector<16x32xf32>
    %106 = arith.subf %100, %105 : vector<16x32xf32>
    %107 = arith.mulf %106, %106 : vector<16x32xf32>
    %cst_28 = arith.constant dense<0.000000e+00> : vector<16xf32>
    %108 = vector.multi_reduction <add>, %107, %cst_28 [1] : vector<16x32xf32> to vector<16xf32>
    %109 = vector.shape_cast %108 : vector<16xf32> to vector<16x1xf32>
    %cst_29 = arith.constant 3.200000e+01 : f32
    %110 = vector.broadcast %cst_29 : f32 to vector<16x1xf32>
    %111 = arith.divf %109, %110 : vector<16x1xf32>
    %112 = vector.broadcast %104 : vector<16x1xf32> to vector<16x32xf32>
    %113 = arith.subf %100, %112 : vector<16x32xf32>
    %cst_30 = arith.constant 9.99999974E-6 : f32
    %114 = vector.broadcast %cst_30 : f32 to vector<16x1xf32>
    %115 = arith.addf %111, %114 : vector<16x1xf32>
    %116 = math.rsqrt %115 : vector<16x1xf32>
    %117 = vector.broadcast %116 : vector<16x1xf32> to vector<16x32xf32>
    %118 = arith.mulf %113, %117 : vector<16x32xf32>
    %119 = vector.broadcast %55 : vector<1x32xf32> to vector<16x32xf32>
    %120 = arith.mulf %118, %119 : vector<16x32xf32>
    %121 = vector.broadcast %56 : vector<1x32xf32> to vector<16x32xf32>
    %122 = arith.addf %120, %121 : vector<16x32xf32>
    %123 = vector.extract_strided_slice %122 {offsets = [15, 0], sizes = [1, 32], strides = [1, 1]} : vector<16x32xf32> to vector<1x32xf32>
    %124 = vector.extract_strided_slice %122 {offsets = [0, 0], sizes = [15, 32], strides = [1, 1]} : vector<16x32xf32> to vector<15x32xf32>
    %125 = tpu.concatenate %123, %124 in 0 : vector<1x32xf32>, vector<15x32xf32> -> vector<16x32xf32>
    %cst_31 = arith.constant 0.000000e+00 : f32
    %126 = vector.shape_cast %45 : vector<16x1xi1> to vector<16x1xi1>
    %127 = vector.broadcast %126 : vector<16x1xi1> to vector<16x32xi1>
    %128 = vector.broadcast %cst_31 : f32 to vector<16x32xf32>
    %129 = arith.select %127, %125, %128 : vector<16x32xi1>, vector<16x32xf32>
    %130 = vector.extract_strided_slice %122 {offsets = [1, 0], sizes = [15, 32], strides = [1, 1]} : vector<16x32xf32> to vector<15x32xf32>
    %131 = vector.extract_strided_slice %122 {offsets = [0, 0], sizes = [1, 32], strides = [1, 1]} : vector<16x32xf32> to vector<1x32xf32>
    %132 = tpu.concatenate %130, %131 in 0 : vector<15x32xf32>, vector<1x32xf32> -> vector<16x32xf32>
    %cst_32 = arith.constant 0.000000e+00 : f32
    %133 = vector.shape_cast %47 : vector<16x1xi1> to vector<16x1xi1>
    %134 = vector.broadcast %133 : vector<16x1xi1> to vector<16x32xi1>
    %135 = vector.broadcast %cst_32 : f32 to vector<16x32xf32>
    %136 = arith.select %134, %132, %135 : vector<16x32xi1>, vector<16x32xf32>
    %137 = tpu.concatenate %129, %122, %136 in 1 : vector<16x32xf32>, vector<16x32xf32>, vector<16x32xf32> -> vector<16x96xf32>
    %138 = arith.truncf %137 : vector<16x96xf32> to vector<16x96xbf16>
    %cst_33 = arith.constant dense<0.000000e+00> : vector<16x64xf32>
    %139 = tpu.matmul %138, %51, %cst_33 {dimension_numbers = #tpu.dot_dimension_numbers<[1], [0], [0], [1], [0, 0, 1, 1], [], []>} : vector<16x96xbf16>, vector<96x64xbf16>, vector<16x64xf32> -> vector<16x64xf32>
    %140 = vector.broadcast %57 : vector<1x64xf32> to vector<16x64xf32>
    %141 = arith.addf %139, %140 : vector<16x64xf32>
    %cst_34 = arith.constant 0.000000e+00 : f32
    %142 = vector.broadcast %cst_34 : f32 to vector<16x64xf32>
    %143 = arith.maximumf %141, %142 : vector<16x64xf32>
    %144 = arith.truncf %143 : vector<16x64xf32> to vector<16x64xbf16>
    %cst_35 = arith.constant dense<0.000000e+00> : vector<16x32xf32>
    %145 = tpu.matmul %144, %52, %cst_35 {dimension_numbers = #tpu.dot_dimension_numbers<[1], [0], [0], [1], [0, 0, 1, 1], [], []>} : vector<16x64xbf16>, vector<64x32xbf16>, vector<16x32xf32> -> vector<16x32xf32>
    %146 = vector.broadcast %58 : vector<1x32xf32> to vector<16x32xf32>
    %147 = arith.addf %145, %146 : vector<16x32xf32>
    %148 = arith.addf %147, %122 : vector<16x32xf32>
    %cst_36 = arith.constant dense<0.000000e+00> : vector<16xf32>
    %149 = vector.multi_reduction <add>, %148, %cst_36 [1] : vector<16x32xf32> to vector<16xf32>
    %150 = vector.shape_cast %149 : vector<16xf32> to vector<16x1xf32>
    %cst_37 = arith.constant 3.200000e+01 : f32
    %151 = vector.broadcast %cst_37 : f32 to vector<16x1xf32>
    %152 = arith.divf %150, %151 : vector<16x1xf32>
    %153 = vector.broadcast %152 : vector<16x1xf32> to vector<16x32xf32>
    %154 = arith.subf %148, %153 : vector<16x32xf32>
    %155 = arith.mulf %154, %154 : vector<16x32xf32>
    %cst_38 = arith.constant dense<0.000000e+00> : vector<16xf32>
    %156 = vector.multi_reduction <add>, %155, %cst_38 [1] : vector<16x32xf32> to vector<16xf32>
    %157 = vector.shape_cast %156 : vector<16xf32> to vector<16x1xf32>
    %cst_39 = arith.constant 3.200000e+01 : f32
    %158 = vector.broadcast %cst_39 : f32 to vector<16x1xf32>
    %159 = arith.divf %157, %158 : vector<16x1xf32>
    %160 = vector.broadcast %152 : vector<16x1xf32> to vector<16x32xf32>
    %161 = arith.subf %148, %160 : vector<16x32xf32>
    %cst_40 = arith.constant 9.99999974E-6 : f32
    %162 = vector.broadcast %cst_40 : f32 to vector<16x1xf32>
    %163 = arith.addf %159, %162 : vector<16x1xf32>
    %164 = math.rsqrt %163 : vector<16x1xf32>
    %165 = vector.broadcast %164 : vector<16x1xf32> to vector<16x32xf32>
    %166 = arith.mulf %161, %165 : vector<16x32xf32>
    %167 = vector.broadcast %59 : vector<1x32xf32> to vector<16x32xf32>
    %168 = arith.mulf %166, %167 : vector<16x32xf32>
    %169 = vector.broadcast %60 : vector<1x32xf32> to vector<16x32xf32>
    %170 = arith.addf %168, %169 : vector<16x32xf32>
    %c288 = arith.constant 288 : index
    %c0_41 = arith.constant 0 : index
    %171 = vector.load %arg3[%c288, %c0_41] : memref<512x128xbf16, #tpu.memory_space<vmem>>, vector<32x96xbf16>
    %c320 = arith.constant 320 : index
    %c0_42 = arith.constant 0 : index
    %172 = vector.load %arg3[%c320, %c0_42] : memref<512x128xbf16, #tpu.memory_space<vmem>>, vector<32x32xbf16>
    %c352 = arith.constant 352 : index
    %c0_43 = arith.constant 0 : index
    %173 = vector.load %arg3[%c352, %c0_43] : memref<512x128xbf16, #tpu.memory_space<vmem>>, vector<96x64xbf16>
    %c448 = arith.constant 448 : index
    %c0_44 = arith.constant 0 : index
    %174 = vector.load %arg3[%c448, %c0_44] : memref<512x128xbf16, #tpu.memory_space<vmem>>, vector<64x32xbf16>
    %175 = vector.extract_strided_slice %48 {offsets = [8, 0], sizes = [1, 96], strides = [1, 1]} : vector<16x128xf32> to vector<1x96xf32>
    %176 = vector.extract_strided_slice %48 {offsets = [9, 0], sizes = [1, 32], strides = [1, 1]} : vector<16x128xf32> to vector<1x32xf32>
    %177 = vector.extract_strided_slice %48 {offsets = [10, 0], sizes = [1, 32], strides = [1, 1]} : vector<16x128xf32> to vector<1x32xf32>
    %178 = vector.extract_strided_slice %48 {offsets = [11, 0], sizes = [1, 32], strides = [1, 1]} : vector<16x128xf32> to vector<1x32xf32>
    %179 = vector.extract_strided_slice %48 {offsets = [12, 0], sizes = [1, 64], strides = [1, 1]} : vector<16x128xf32> to vector<1x64xf32>
    %180 = vector.extract_strided_slice %48 {offsets = [13, 0], sizes = [1, 32], strides = [1, 1]} : vector<16x128xf32> to vector<1x32xf32>
    %181 = vector.extract_strided_slice %48 {offsets = [14, 0], sizes = [1, 32], strides = [1, 1]} : vector<16x128xf32> to vector<1x32xf32>
    %182 = vector.extract_strided_slice %48 {offsets = [15, 0], sizes = [1, 32], strides = [1, 1]} : vector<16x128xf32> to vector<1x32xf32>
    %183 = arith.truncf %170 : vector<16x32xf32> to vector<16x32xbf16>
    %cst_45 = arith.constant dense<0.000000e+00> : vector<16x96xf32>
    %184 = tpu.matmul %183, %171, %cst_45 {dimension_numbers = #tpu.dot_dimension_numbers<[1], [0], [0], [1], [0, 0, 1, 1], [], []>} : vector<16x32xbf16>, vector<32x96xbf16>, vector<16x96xf32> -> vector<16x96xf32>
    %185 = vector.broadcast %175 : vector<1x96xf32> to vector<16x96xf32>
    %186 = arith.addf %184, %185 : vector<16x96xf32>
    %187 = vector.extract_strided_slice %186 {offsets = [0, 0], sizes = [16, 16], strides = [1, 1]} : vector<16x96xf32> to vector<16x16xf32>
    %188 = vector.extract_strided_slice %186 {offsets = [0, 16], sizes = [16, 16], strides = [1, 1]} : vector<16x96xf32> to vector<16x16xf32>
    %189 = tpu.concatenate %187, %188 in 0 : vector<16x16xf32>, vector<16x16xf32> -> vector<32x16xf32>
    %190 = vector.extract_strided_slice %186 {offsets = [0, 32], sizes = [16, 16], strides = [1, 1]} : vector<16x96xf32> to vector<16x16xf32>
    %191 = vector.extract_strided_slice %186 {offsets = [0, 48], sizes = [16, 16], strides = [1, 1]} : vector<16x96xf32> to vector<16x16xf32>
    %192 = tpu.concatenate %190, %191 in 0 : vector<16x16xf32>, vector<16x16xf32> -> vector<32x16xf32>
    %193 = vector.extract_strided_slice %186 {offsets = [0, 64], sizes = [16, 16], strides = [1, 1]} : vector<16x96xf32> to vector<16x16xf32>
    %194 = vector.extract_strided_slice %186 {offsets = [0, 80], sizes = [16, 16], strides = [1, 1]} : vector<16x96xf32> to vector<16x16xf32>
    %195 = tpu.concatenate %193, %194 in 0 : vector<16x16xf32>, vector<16x16xf32> -> vector<32x16xf32>
    %196 = arith.truncf %189 : vector<32x16xf32> to vector<32x16xbf16>
    %197 = arith.truncf %192 : vector<32x16xf32> to vector<32x16xbf16>
    %cst_46 = arith.constant dense<0.000000e+00> : vector<32x32xf32>
    %198 = tpu.matmul %196, %197, %cst_46 {dimension_numbers = #tpu.dot_dimension_numbers<[1], [1], [0], [0], [0, 0, 1, 0], [], []>} : vector<32x16xbf16>, vector<32x16xbf16>, vector<32x32xf32> -> vector<32x32xf32>
    %cst_47 = arith.constant 2.500000e-01 : f32
    %199 = vector.broadcast %cst_47 : f32 to vector<32x32xf32>
    %200 = arith.mulf %198, %199 : vector<32x32xf32>
    %201 = arith.addf %200, %40 : vector<32x32xf32>
    %cst_48 = arith.constant dense<0xFF800000> : vector<32xf32>
    %202 = vector.multi_reduction <maximumf>, %201, %cst_48 [1] : vector<32x32xf32> to vector<32xf32>
    %203 = vector.shape_cast %202 : vector<32xf32> to vector<32x1xf32>
    %204 = vector.broadcast %203 : vector<32x1xf32> to vector<32x32xf32>
    %205 = arith.subf %201, %204 : vector<32x32xf32>
    %206 = math.exp %205 : vector<32x32xf32>
    %cst_49 = arith.constant dense<0.000000e+00> : vector<32xf32>
    %207 = vector.multi_reduction <add>, %206, %cst_49 [1] : vector<32x32xf32> to vector<32xf32>
    %208 = vector.shape_cast %207 : vector<32xf32> to vector<32x1xf32>
    %209 = tpu.reciprocal %208 {approx = true} : vector<32x1xf32> -> vector<32x1xf32>
    %210 = vector.broadcast %209 : vector<32x1xf32> to vector<32x32xf32>
    %211 = arith.mulf %206, %210 : vector<32x32xf32>
    %212 = arith.truncf %211 : vector<32x32xf32> to vector<32x32xbf16>
    %213 = arith.truncf %195 : vector<32x16xf32> to vector<32x16xbf16>
    %cst_50 = arith.constant dense<0.000000e+00> : vector<32x16xf32>
    %214 = tpu.matmul %212, %213, %cst_50 {dimension_numbers = #tpu.dot_dimension_numbers<[1], [0], [0], [1], [0, 0, 1, 1], [], []>} : vector<32x32xbf16>, vector<32x16xbf16>, vector<32x16xf32> -> vector<32x16xf32>
    %215 = vector.extract_strided_slice %214 {offsets = [0, 0], sizes = [16, 16], strides = [1, 1]} : vector<32x16xf32> to vector<16x16xf32>
    %216 = vector.extract_strided_slice %214 {offsets = [16, 0], sizes = [16, 16], strides = [1, 1]} : vector<32x16xf32> to vector<16x16xf32>
    %217 = tpu.concatenate %215, %216 in 1 : vector<16x16xf32>, vector<16x16xf32> -> vector<16x32xf32>
    %218 = arith.truncf %217 : vector<16x32xf32> to vector<16x32xbf16>
    %cst_51 = arith.constant dense<0.000000e+00> : vector<16x32xf32>
    %219 = tpu.matmul %218, %172, %cst_51 {dimension_numbers = #tpu.dot_dimension_numbers<[1], [0], [0], [1], [0, 0, 1, 1], [], []>} : vector<16x32xbf16>, vector<32x32xbf16>, vector<16x32xf32> -> vector<16x32xf32>
    %220 = vector.broadcast %176 : vector<1x32xf32> to vector<16x32xf32>
    %221 = arith.addf %219, %220 : vector<16x32xf32>
    %222 = arith.addf %221, %170 : vector<16x32xf32>
    %cst_52 = arith.constant dense<0.000000e+00> : vector<16xf32>
    %223 = vector.multi_reduction <add>, %222, %cst_52 [1] : vector<16x32xf32> to vector<16xf32>
    %224 = vector.shape_cast %223 : vector<16xf32> to vector<16x1xf32>
    %cst_53 = arith.constant 3.200000e+01 : f32
    %225 = vector.broadcast %cst_53 : f32 to vector<16x1xf32>
    %226 = arith.divf %224, %225 : vector<16x1xf32>
    %227 = vector.broadcast %226 : vector<16x1xf32> to vector<16x32xf32>
    %228 = arith.subf %222, %227 : vector<16x32xf32>
    %229 = arith.mulf %228, %228 : vector<16x32xf32>
    %cst_54 = arith.constant dense<0.000000e+00> : vector<16xf32>
    %230 = vector.multi_reduction <add>, %229, %cst_54 [1] : vector<16x32xf32> to vector<16xf32>
    %231 = vector.shape_cast %230 : vector<16xf32> to vector<16x1xf32>
    %cst_55 = arith.constant 3.200000e+01 : f32
    %232 = vector.broadcast %cst_55 : f32 to vector<16x1xf32>
    %233 = arith.divf %231, %232 : vector<16x1xf32>
    %234 = vector.broadcast %226 : vector<16x1xf32> to vector<16x32xf32>
    %235 = arith.subf %222, %234 : vector<16x32xf32>
    %cst_56 = arith.constant 9.99999974E-6 : f32
    %236 = vector.broadcast %cst_56 : f32 to vector<16x1xf32>
    %237 = arith.addf %233, %236 : vector<16x1xf32>
    %238 = math.rsqrt %237 : vector<16x1xf32>
    %239 = vector.broadcast %238 : vector<16x1xf32> to vector<16x32xf32>
    %240 = arith.mulf %235, %239 : vector<16x32xf32>
    %241 = vector.broadcast %177 : vector<1x32xf32> to vector<16x32xf32>
    %242 = arith.mulf %240, %241 : vector<16x32xf32>
    %243 = vector.broadcast %178 : vector<1x32xf32> to vector<16x32xf32>
    %244 = arith.addf %242, %243 : vector<16x32xf32>
    %245 = vector.extract_strided_slice %244 {offsets = [15, 0], sizes = [1, 32], strides = [1, 1]} : vector<16x32xf32> to vector<1x32xf32>
    %246 = vector.extract_strided_slice %244 {offsets = [0, 0], sizes = [15, 32], strides = [1, 1]} : vector<16x32xf32> to vector<15x32xf32>
    %247 = tpu.concatenate %245, %246 in 0 : vector<1x32xf32>, vector<15x32xf32> -> vector<16x32xf32>
    %cst_57 = arith.constant 0.000000e+00 : f32
    %248 = vector.shape_cast %45 : vector<16x1xi1> to vector<16x1xi1>
    %249 = vector.broadcast %248 : vector<16x1xi1> to vector<16x32xi1>
    %250 = vector.broadcast %cst_57 : f32 to vector<16x32xf32>
    %251 = arith.select %249, %247, %250 : vector<16x32xi1>, vector<16x32xf32>
    %252 = vector.extract_strided_slice %244 {offsets = [1, 0], sizes = [15, 32], strides = [1, 1]} : vector<16x32xf32> to vector<15x32xf32>
    %253 = vector.extract_strided_slice %244 {offsets = [0, 0], sizes = [1, 32], strides = [1, 1]} : vector<16x32xf32> to vector<1x32xf32>
    %254 = tpu.concatenate %252, %253 in 0 : vector<15x32xf32>, vector<1x32xf32> -> vector<16x32xf32>
    %cst_58 = arith.constant 0.000000e+00 : f32
    %255 = vector.shape_cast %47 : vector<16x1xi1> to vector<16x1xi1>
    %256 = vector.broadcast %255 : vector<16x1xi1> to vector<16x32xi1>
    %257 = vector.broadcast %cst_58 : f32 to vector<16x32xf32>
    %258 = arith.select %256, %254, %257 : vector<16x32xi1>, vector<16x32xf32>
    %259 = tpu.concatenate %251, %244, %258 in 1 : vector<16x32xf32>, vector<16x32xf32>, vector<16x32xf32> -> vector<16x96xf32>
    %260 = arith.truncf %259 : vector<16x96xf32> to vector<16x96xbf16>
    %cst_59 = arith.constant dense<0.000000e+00> : vector<16x64xf32>
    %261 = tpu.matmul %260, %173, %cst_59 {dimension_numbers = #tpu.dot_dimension_numbers<[1], [0], [0], [1], [0, 0, 1, 1], [], []>} : vector<16x96xbf16>, vector<96x64xbf16>, vector<16x64xf32> -> vector<16x64xf32>
    %262 = vector.broadcast %179 : vector<1x64xf32> to vector<16x64xf32>
    %263 = arith.addf %261, %262 : vector<16x64xf32>
    %cst_60 = arith.constant 0.000000e+00 : f32
    %264 = vector.broadcast %cst_60 : f32 to vector<16x64xf32>
    %265 = arith.maximumf %263, %264 : vector<16x64xf32>
    %266 = arith.truncf %265 : vector<16x64xf32> to vector<16x64xbf16>
    %cst_61 = arith.constant dense<0.000000e+00> : vector<16x32xf32>
    %267 = tpu.matmul %266, %174, %cst_61 {dimension_numbers = #tpu.dot_dimension_numbers<[1], [0], [0], [1], [0, 0, 1, 1], [], []>} : vector<16x64xbf16>, vector<64x32xbf16>, vector<16x32xf32> -> vector<16x32xf32>
    %268 = vector.broadcast %180 : vector<1x32xf32> to vector<16x32xf32>
    %269 = arith.addf %267, %268 : vector<16x32xf32>
    %270 = arith.addf %269, %244 : vector<16x32xf32>
    %cst_62 = arith.constant dense<0.000000e+00> : vector<16xf32>
    %271 = vector.multi_reduction <add>, %270, %cst_62 [1] : vector<16x32xf32> to vector<16xf32>
    %272 = vector.shape_cast %271 : vector<16xf32> to vector<16x1xf32>
    %cst_63 = arith.constant 3.200000e+01 : f32
    %273 = vector.broadcast %cst_63 : f32 to vector<16x1xf32>
    %274 = arith.divf %272, %273 : vector<16x1xf32>
    %275 = vector.broadcast %274 : vector<16x1xf32> to vector<16x32xf32>
    %276 = arith.subf %270, %275 : vector<16x32xf32>
    %277 = arith.mulf %276, %276 : vector<16x32xf32>
    %cst_64 = arith.constant dense<0.000000e+00> : vector<16xf32>
    %278 = vector.multi_reduction <add>, %277, %cst_64 [1] : vector<16x32xf32> to vector<16xf32>
    %279 = vector.shape_cast %278 : vector<16xf32> to vector<16x1xf32>
    %cst_65 = arith.constant 3.200000e+01 : f32
    %280 = vector.broadcast %cst_65 : f32 to vector<16x1xf32>
    %281 = arith.divf %279, %280 : vector<16x1xf32>
    %282 = vector.broadcast %274 : vector<16x1xf32> to vector<16x32xf32>
    %283 = arith.subf %270, %282 : vector<16x32xf32>
    %cst_66 = arith.constant 9.99999974E-6 : f32
    %284 = vector.broadcast %cst_66 : f32 to vector<16x1xf32>
    %285 = arith.addf %281, %284 : vector<16x1xf32>
    %286 = math.rsqrt %285 : vector<16x1xf32>
    %287 = vector.broadcast %286 : vector<16x1xf32> to vector<16x32xf32>
    %288 = arith.mulf %283, %287 : vector<16x32xf32>
    %289 = vector.broadcast %181 : vector<1x32xf32> to vector<16x32xf32>
    %290 = arith.mulf %288, %289 : vector<16x32xf32>
    %291 = vector.broadcast %182 : vector<1x32xf32> to vector<16x32xf32>
    %292 = arith.addf %290, %291 : vector<16x32xf32>
    %c0_67 = arith.constant 0 : index
    %c0_68 = arith.constant 0 : index
    %293 = vector.load %arg4[%c0_67, %c0_68] : memref<16x32xf32, #tpu.memory_space<vmem>>, vector<16x32xf32>
    tpu.vector_store %arg4[%c0_67, %c0_68], %292 {strides = array<i32>} : memref<16x32xf32, #tpu.memory_space<vmem>>, vector<16x32xf32>,
    return
  }
}

</mosaic_0001>

<llo_original>
// kernel: tpu_custom_call.1
$region0: #{tpu_custom_call.1}
  #allocation0 [shape = 'u32[]', space=smem, size = 0x4, offset = 0x4, fixed_abs, tag = 'smem constant byte address 0x4 - core index']
  #allocation1 [shape = 'u32[144,128]{1,0:T(1,128)}', space=vmem, size = 0x12000, scoped, tag = 'internal scratch']
  %s0 = inlined_call_operand.vmem [shape: s32[16,2], index: 0, kind: input, shape index: {}]
  %s1 = inlined_call_operand.vmem [shape: f32[1,16], index: 1, kind: input, shape index: {}]
  %s2 = inlined_call_operand.vmem [shape: f32[16,128], index: 2, kind: input, shape index: {}]
  %s3 = inlined_call_operand.hbm [shape: bf16[512,128], index: 3, kind: input, shape index: {}]
  %s4 = inlined_call_operand.hbm [shape: f32[16,32], index: 4, kind: output, shape index: {}]
  %s5 = sld [smem:[#allocation0]]
  $region30: #{tpu_custom_call.1} parent=0
    _
  %s7 = ssub.s32 1, %s5
  %s8 = scalar_select 0, %s7, %s5
  $region1: #{tpu_custom_call.1} parent=0
    #allocation2 [shape = 'u8[131072]{0}', space=vmem, size = 0x20000, scoped, tag = 'input window, operand 3, single buffered']
    #allocation3 [shape = 's32[1]{0}', space=sflag, size = 0x4, scoped, tag = 'scoped memory for tpu_custom_call.1']
    #allocation4 [shape = 's32[1]{0}', space=sflag, size = 0x4, scoped, tag = 'scoped memory for tpu_custom_call.1']
    #allocation5 [shape = 'u8[8192]{0}', space=vmem, size = 0x2000, scoped, tag = 'output window, operand 0, single buffered']
    %9 = vsyncpa [#allocation3], 0
    %10 = vsyncpa [#allocation4], 0
    // Predicated region
    $region2: #{tpu_custom_call.1} parent=1 // pred_check
      _
    $region3: #{tpu_custom_call.1} parent=1 // pred_check_branch
      %12 = sbr.rel (0) target = $region5
    $region4: #{tpu_custom_call.1} parent=1 // pred_region
      _
    $region5: #{tpu_custom_call.1} parent=1 // pred_fallthru
      _
    // Predicated region
    $region6: #{tpu_custom_call.1} parent=1 // pred_check
      _
    $region7: #{tpu_custom_call.1} parent=1 // pred_check_branch
      %14 = sbr.rel (0) target = $region9
    $region8: #{tpu_custom_call.1} parent=1 // pred_region
      _
    $region9: #{tpu_custom_call.1} parent=1 // pred_fallthru
      _
    // Predicated region
    $region10: #{tpu_custom_call.1} parent=1 // pred_check
      _
    $region11: #{tpu_custom_call.1} parent=1 // pred_check_branch
      %16 = sbr.rel (0) target = $region13
    $region12: #{tpu_custom_call.1} parent=1 // pred_region
      _
    $region13: #{tpu_custom_call.1} parent=1 // pred_fallthru
      _
    // Predicated region
    $region14: #{tpu_custom_call.1} parent=1 // pred_check
      _
    $region15: #{tpu_custom_call.1} parent=1 // pred_check_branch
      %18 = sbr.rel (0) target = $region17
    $region16: #{tpu_custom_call.1} parent=1 // pred_region
      %s20 = ssub.s32 4096, 4096
      %21 = vsyncadd [#allocation3], %s20
      %s22 = sshll.u32 [#allocation2], 4
      %s23 = int_to_ptr.vmem [resolvable:$true] %s22
      %28 = dma.hbm_to_vmem [thread:$0]  %s3, 4096, %s23, [#allocation3], 64, 64, 4
    $region17: #{tpu_custom_call.1} parent=1 // pred_fallthru
      _
    // Predicated region
    $region18: #{tpu_custom_call.1} parent=1 // pred_check
      _
    $region19: #{tpu_custom_call.1} parent=1 // pred_check_branch
      %30 = sbr.rel (0) target = $region21
    $region20: #{tpu_custom_call.1} parent=1 // pred_region
      %31 = dma.done [#allocation3], 4096
    $region21: #{tpu_custom_call.1} parent=1 // pred_fallthru
      _
    %v33 = vld [vmem:[%s0] sm:$0xff]
    %v34 = vld [vmem:[%s0 + $0x8] sm:$0xff]
    %v35 = vlaneseq
    %v36 = vand.u32 %v35, 127
    %37 = vset.pattern.permute.xlu0 0
    %38 = vperm.xlu0 %37, %v33
    %v39 = vpop.permute.xlu0 %38
    %40 = vset.pattern.permute.xlu0 0
    %41 = vperm.xlu0 %40, %v34
    %v42 = vpop.permute.xlu0 %41
    %vm43 = vcmp.eq.s32.totalorder %v36, %v39
    %vm44 = vcmp.eq.s32.totalorder %v36, %v42
    %v45 = vadd.s32 %v33, 32
    %v46 = vadd.s32 %v34, 32
    %47 = vset.pattern.permute.xlu0 1
    %48 = vperm.xlu0 %47, %v45
    %v49 = vpop.permute.xlu0 %48
    %50 = vset.pattern.permute.xlu0 1
    %51 = vperm.xlu0 %50, %v46
    %v52 = vpop.permute.xlu0 %51
    %vm53 = vcmp.eq.s32.totalorder %v36, %v49
    %vm54 = vcmp.eq.s32.totalorder %v36, %v52
    %vm55 = vmor %vm43, %vm53
    %vm56 = vmor %vm44, %vm54
    %v57 = vsel %vm55, 1, 0
    %v58 = vsel %vm56, 1, 0
    %v59 = vcvt.s32.f32 %v57
    %v60 = vcvt.s32.f32 %v58
    %v61 = vpack.c.bf16 %v60, %v59
    %v62 = vld [vmem:[#allocation2] sm:$0xf]
    %v63 = vld [vmem:[#allocation2 + $0x4] sm:$0xf]
    %v64 = vld [vmem:[#allocation2 + $0x8] sm:$0xf]
    %v65 = vld [vmem:[#allocation2 + $0xc] sm:$0xf]
    %v66 = vld [vmem:[#allocation2 + $0x10] sm:$0xf]
    %v67 = vld [vmem:[#allocation2 + $0x14] sm:$0xf]
    %v68 = vld [vmem:[#allocation2 + $0x18] sm:$0xf]
    %v69 = vld [vmem:[#allocation2 + $0x1c] sm:$0xf]
    %v78 = vunpack.c.l.b16 %v62
    %v79 = vunpack.c.l.b16 %v63
    %v80 = vunpack.c.l.b16 %v64
    %v81 = vunpack.c.l.b16 %v65
    %v82 = vunpack.c.l.b16 %v66
    %v83 = vunpack.c.l.b16 %v67
    %v84 = vunpack.c.l.b16 %v68
    %v85 = vunpack.c.l.b16 %v69
    %v86 = vpack.c.b16 %v79, %v78
    %v87 = vpack.c.b16 %v81, %v80
    %v88 = vpack.c.b16 %v83, %v82
    %v89 = vpack.c.b16 %v85, %v84
    %vm94 = vcmask 523264
    %v96 = vsel %vm94, %v61, 0
    %98 = vmatprep.subr.bf16.mxu0 0
    %99 = vmatpush1.bf16.msra.mxu0 %v86
    %100 = vmatprep.subr.bf16.mxu0 0
    %101 = vmatpush1.bf16.msra.mxu0 %v87
    %102 = vmatprep.subr.bf16.mxu0 0
    %103 = vmatpush1.bf16.msra.mxu0 %v88
    %104 = vmatprep.subr.bf16.mxu0 0
    %105 = vmatpush1.bf16.msra.mxu0 %v89
    %106 = vmatprep.subr.bf16.mxu0 0
    %107 = vmatpush1.bf16.msra.mxu0 0
    %108 = vmatprep.subr.bf16.mxu0 0
    %109 = vmatpush1.bf16.msra.mxu0 0
    %110 = vmatprep.subr.bf16.mxu0 0
    %111 = vmatpush1.bf16.msra.mxu0 0
    %112 = vmatprep.subr.bf16.mxu0 0
    %113 = vmatpush1.bf16.msra.mxu0 0
    %114 = vmatprep.subr.bf16.mxu0 0
    %115 = vmatpush1.bf16.msra.mxu0 0
    %116 = vmatprep.subr.bf16.mxu0 0
    %117 = vmatpush1.bf16.msra.mxu0 0
    %118 = vmatprep.subr.bf16.mxu0 0
    %119 = vmatpush1.bf16.msra.mxu0 0
    %120 = vmatprep.subr.bf16.mxu0 0
    %121 = vmatpush1.bf16.msra.mxu0 0
    %122 = vmatprep.subr.bf16.mxu0 0
    %123 = vmatpush1.bf16.msra.mxu0 0
    %124 = vmatprep.subr.bf16.mxu0 0
    %125 = vmatpush1.bf16.msra.mxu0 0
    %126 = vmatprep.subr.bf16.mxu0 0
    %127 = vmatpush1.bf16.msra.mxu0 0
    %128 = vmatprep.subr.bf16.mxu0 0
    %129 = vmatpush1.bf16.msra.mxu0 0
    %130 = vmatprep.mubr.bf16.mxu0 0
    %131 = vmatmul.mubr.bf16.gmra.mrb[0].mxu0 %v96
    %v132 = vpop.f32.mrb[0].mxu0
    %v133 = vadd.f32 0.0, %v132
    %v134 = vpop.f32.mrb[0].mxu0
    %v135 = vpop.f32.mrb[0].mxu0
    %v136 = vadd.f32 0.0, %v135
    %v137 = vpop.f32.mrb[0].mxu0
    %138 = vdwg.mxu0
    %v139 = vlaneseq
    %v140 = vshrl.u32 %v139, 7
    %v141 = vadd.s32 %v140, 8
    %v142 = vadd.s32 %v140, 16
    %v143 = vadd.s32 %v140, 24
    %v144 = vshra.s32 %v140, 4
    %v145 = vshra.s32 %v141, 4
    %v146 = vshra.s32 %v142, 4
    %v147 = vshra.s32 %v143, 4
    %v148 = vshra.s32 %v36, 4
    %vm149 = vcmp.eq.s32.totalorder %v144, %v148
    %vm150 = vcmp.eq.s32.totalorder %v145, %v148
    %vm151 = vcmp.eq.s32.totalorder %v146, %v148
    %vm152 = vcmp.eq.s32.totalorder %v147, %v148
    %v153 = vand.u32 %v140, 15
    %v154 = vand.u32 %v141, 15
    %v155 = vand.u32 %v142, 15
    %v156 = vand.u32 %v143, 15
    %v157 = vshra.s32 %v153, 3
    %v158 = vshra.s32 %v154, 3
    %v159 = vshra.s32 %v155, 3
    %v160 = vshra.s32 %v156, 3
    %v161 = vand.u32 %v36, 15
    %v162 = vshra.s32 %v161, 3
    %vm163 = vcmp.eq.s32.totalorder %v157, %v162
    %vm164 = vcmp.eq.s32.totalorder %v158, %v162
    %vm165 = vcmp.eq.s32.totalorder %v159, %v162
    %vm166 = vcmp.eq.s32.totalorder %v160, %v162
    %v167 = vld [vmem:[%s1] sm:$0x1]
    %v169 = vlaneseq
    %v170 = vshrl.u32 %v169, 7
    %v171 = vsub.s32 0, %v170
    %v172 = vrot.slane %v167, %v171
    %173 = vrot.lane.b32.xlu0 %v172, 16
    %v174 = vpop.permute.xlu0 %173
    %vm176 = vcmask 130048
    %v177 = vsel %vm176, %v167, %v174
    %vm178 = vmand %vm149, %vm163
    %vm179 = vmand %vm150, %vm164
    %vm180 = vmand %vm151, %vm165
    %vm181 = vmand %vm152, %vm166
    %vm182 = vcmp.lt.f32.partialorder %v177, 0.5
    %v183 = vsel %vm182, 1, 0
    %v184 = vlaneseq
    %v185 = vshrl.u32 %v184, 7
    %v186 = vsub.s32 0, %v185
    %v187 = vrot.slane %v183, %v186
    %vm188 = vcmp.eq.s32.totalorder %v187, 1
    %vm189 = vmand %vm178, %vm188
    %vm190 = vmand %vm179, %vm188
    %vm191 = vmand %vm180, %vm188
    %vm192 = vmand %vm181, %vm188
    %v193 = vsel %vm189, 0.0, -1e+09
    %v194 = vsel %vm190, 0.0, -1e+09
    %v195 = vsel %vm191, 0.0, -1e+09
    %v196 = vsel %vm192, 0.0, -1e+09
    %v197 = vand.u32 %v140, 7
    %v198 = vand.u32 %v141, 7
    %vm199 = vcmp.ne.s32.totalorder %v197, 0
    %vm200 = vcmp.ne.s32.totalorder %v198, 0
    %vm201 = vcmp.ne.s32.totalorder %v197, 7
    %vm202 = vcmp.ne.s32.totalorder %v198, 7
    %v203 = vld [vmem:[%s2] sm:$0xff]
    %v204 = vld [vmem:[%s2 + $0x8] sm:$0xff]
    %v205 = vld [vmem:[#allocation2 + $0x20] sm:$0xf]
    %v206 = vld [vmem:[#allocation2 + $0x24] sm:$0xf]
    %v207 = vld [vmem:[#allocation2 + $0x28] sm:$0xf]
    %v208 = vld [vmem:[#allocation2 + $0x2c] sm:$0xf]
    %v209 = vld [vmem:[#allocation2 + $0x30] sm:$0xf]
    %v210 = vld [vmem:[#allocation2 + $0x34] sm:$0xf]
    %v211 = vld [vmem:[#allocation2 + $0x38] sm:$0xf]
    %v212 = vld [vmem:[#allocation2 + $0x3c] sm:$0xf]
    %v213 = vld [vmem:[#allocation2 + $0x40] sm:$0xf]
    %v214 = vld [vmem:[#allocation2 + $0x44] sm:$0xf]
    %v215 = vld [vmem:[#allocation2 + $0x48] sm:$0xf]
    %v216 = vld [vmem:[#allocation2 + $0x4c] sm:$0xf]
    %v217 = vld [vmem:[#allocation2 + $0x50] sm:$0xf]
    %v218 = vld [vmem:[#allocation2 + $0x54] sm:$0xf]
    %v219 = vld [vmem:[#allocation2 + $0x58] sm:$0xf]
    %v220 = vld [vmem:[#allocation2 + $0x5c] sm:$0xf]
    %v221 = vld [vmem:[#allocation2 + $0x60] sm:$0xf]
    %v222 = vld [vmem:[#allocation2 + $0x64] sm:$0xf]
    %v223 = vld [vmem:[#allocation2 + $0x68] sm:$0xf]
    %v224 = vld [vmem:[#allocation2 + $0x6c] sm:$0xf]
    %v225 = vld [vmem:[#allocation2 + $0x70] sm:$0xf]
    %v226 = vld [vmem:[#allocation2 + $0x74] sm:$0xf]
    %v227 = vld [vmem:[#allocation2 + $0x78] sm:$0xf]
    %v228 = vld [vmem:[#allocation2 + $0x7c] sm:$0xf]
    %v229 = vld [vmem:[#allocation2 + $0x80] sm:$0xf]
    %v230 = vld [vmem:[#allocation2 + $0x84] sm:$0xf]
    %v231 = vld [vmem:[#allocation2 + $0x88] sm:$0xf]
    %v232 = vld [vmem:[#allocation2 + $0x8c] sm:$0xf]
    %v233 = vpack.c.bf16 %v136, %v133
    %v234 = vlaneseq
    %v235 = vshrl.u32 %v234, 7
    %v236 = vsub.s32 0, %v235
    %v237 = vrot.slane %v203, %v236
    %v242 = vunpack.c.l.b16 %v205
    %v243 = vunpack.c.l.b16 %v206
    %v244 = vunpack.c.l.b16 %v207
    %v245 = vunpack.c.l.b16 %v208
    %v246 = vpack.c.b16 %v243, %v242
    %v247 = vpack.c.b16 %v245, %v244
    %vm250 = vcmask 261120
    %v252 = vsel %vm250, %v233, 0
    %254 = vmatprep.subr.bf16.mxu0 0
    %255 = vmatpush1.bf16.msra.mxu0 %v246
    %256 = vmatprep.subr.bf16.mxu0 0
    %257 = vmatpush1.bf16.msra.mxu0 %v247
    %258 = vmatprep.subr.bf16.mxu0 0
    %259 = vmatpush1.bf16.msra.mxu0 0
    %260 = vmatprep.subr.bf16.mxu0 0
    %261 = vmatpush1.bf16.msra.mxu0 0
    %262 = vmatprep.subr.bf16.mxu0 0
    %263 = vmatpush1.bf16.msra.mxu0 0
    %264 = vmatprep.subr.bf16.mxu0 0
    %265 = vmatpush1.bf16.msra.mxu0 0
    %266 = vmatprep.subr.bf16.mxu0 0
    %267 = vmatpush1.bf16.msra.mxu0 0
    %268 = vmatprep.subr.bf16.mxu0 0
    %269 = vmatpush1.bf16.msra.mxu0 0
    %270 = vmatprep.subr.bf16.mxu0 0
    %271 = vmatpush1.bf16.msra.mxu0 0
    %272 = vmatprep.subr.bf16.mxu0 0
    %273 = vmatpush1.bf16.msra.mxu0 0
    %274 = vmatprep.subr.bf16.mxu0 0
    %275 = vmatpush1.bf16.msra.mxu0 0
    %276 = vmatprep.subr.bf16.mxu0 0
    %277 = vmatpush1.bf16.msra.mxu0 0
    %278 = vmatprep.subr.bf16.mxu0 0
    %279 = vmatpush1.bf16.msra.mxu0 0
    %280 = vmatprep.subr.bf16.mxu0 0
    %281 = vmatpush1.bf16.msra.mxu0 0
    %282 = vmatprep.subr.bf16.mxu0 0
    %283 = vmatpush1.bf16.msra.mxu0 0
    %284 = vmatprep.subr.bf16.mxu0 0
    %285 = vmatpush1.bf16.msra.mxu0 0
    %286 = vmatprep.mubr.bf16.mxu0 0
    %287 = vmatmul.mubr.bf16.gmra.mrb[0].mxu0 %v252
    %v288 = vpop.f32.mrb[0].mxu0
    %v289 = vadd.f32 %v237, %v288
    %v290 = vpop.f32.mrb[0].mxu0
    %v291 = vpop.f32.mrb[0].mxu0
    %v292 = vadd.f32 %v237, %v291
    %v293 = vpop.f32.mrb[0].mxu0
    %294 = vdwg.mxu0
    %297 = vrot.lane.b32.xlu0 %v289, 112
    %v298 = vpop.permute.xlu0 %297
    %299 = vrot.lane.b32.xlu0 %v292, 112
    %v300 = vpop.permute.xlu0 %299
    %v303 = vpack.c.bf16 %v292, %v289
    %v304 = vpack.c.bf16 %v300, %v298
    %307 = vrot.lane.b32.xlu0 %v303, 96
    %v308 = vpop.permute.xlu0 %307
    %309 = vrot.lane.b32.xlu0 %v304, 96
    %v310 = vpop.permute.xlu0 %309
    %v312 = vsel %vm176, %v303, 0
    %v315 = vsel %vm176, %v304, 0
    %v318 = vsel %vm176, %v308, 0
    %v321 = vsel %vm176, %v310, 0
    %323 = vmatprep.subr.bf16.mxu0 0
    %324 = vmatpush1.bf16.xpose.msra.mxu0 %v318
    %325 = vmatprep.subr.bf16.mxu0 0
    %326 = vmatpush1.bf16.xpose.msra.mxu0 %v321
    %327 = vmatprep.subr.bf16.mxu0 0
    %328 = vmatpush1.bf16.xpose.msra.mxu0 0
    %329 = vmatprep.subr.bf16.mxu0 0
    %330 = vmatpush1.bf16.xpose.msra.mxu0 0
    %331 = vmatprep.subr.bf16.mxu0 0
    %332 = vmatpush1.bf16.xpose.msra.mxu0 0
    %333 = vmatprep.subr.bf16.mxu0 0
    %334 = vmatpush1.bf16.xpose.msra.mxu0 0
    %335 = vmatprep.subr.bf16.mxu0 0
    %336 = vmatpush1.bf16.xpose.msra.mxu0 0
    %337 = vmatprep.subr.bf16.mxu0 0
    %338 = vmatpush1.bf16.xpose.msra.mxu0 0
    %339 = vmatprep.subr.bf16.mxu0 0
    %340 = vmatpush1.bf16.xpose.msra.mxu0 0
    %341 = vmatprep.subr.bf16.mxu0 0
    %342 = vmatpush1.bf16.xpose.msra.mxu0 0
    %343 = vmatprep.subr.bf16.mxu0 0
    %344 = vmatpush1.bf16.xpose.msra.mxu0 0
    %345 = vmatprep.subr.bf16.mxu0 0
    %346 = vmatpush1.bf16.xpose.msra.mxu0 0
    %347 = vmatprep.subr.bf16.mxu0 0
    %348 = vmatpush1.bf16.xpose.msra.mxu0 0
    %349 = vmatprep.subr.bf16.mxu0 0
    %350 = vmatpush1.bf16.xpose.msra.mxu0 0
    %351 = vmatprep.subr.bf16.mxu0 0
    %352 = vmatpush1.bf16.xpose.msra.mxu0 0
    %353 = vmatprep.subr.bf16.mxu0 0
    %354 = vmatpush1.bf16.xpose.msra.mxu0 0
    %355 = vmatprep.mubr.bf16.mxu0 0
    %356 = vmatmul.mubr.bf16.gmra.mrb[0].mxu0 %v312
    %v357 = vpop.f32.mrb[0].mxu0
    %v358 = vadd.f32 0.0, %v357
    %v359 = vpop.f32.mrb[0].mxu0
    %v360 = vpop.f32.mrb[0].mxu0
    %v361 = vadd.f32 0.0, %v360
    %v362 = vpop.f32.mrb[0].mxu0
    %363 = vmatprep.mubr.bf16.mxu0 0
    %364 = vmatmul.mubr.bf16.gmra.mrb[0].mxu0 %v315
    %v365 = vpop.f32.mrb[0].mxu0
    %v366 = vadd.f32 0.0, %v365
    %v367 = vpop.f32.mrb[0].mxu0
    %v368 = vpop.f32.mrb[0].mxu0
    %v369 = vadd.f32 0.0, %v368
    %v370 = vpop.f32.mrb[0].mxu0
    %371 = vdwg.mxu0
    %v372 = vmul.f32 %v358, 0.25
    %v373 = vmul.f32 %v361, 0.25
    %v374 = vmul.f32 %v366, 0.25
    %v375 = vmul.f32 %v369, 0.25
    %v376 = vadd.f32 %v372, %v193
    %v377 = vadd.f32 %v373, %v194
    %v378 = vadd.f32 %v374, %v195
    %v379 = vadd.f32 %v375, %v196
    %v380 = vsel %vm250, %v376, -inf
    %381 = vmax.xlane.f32.xlu0 %v380
    %v382 = vpop.xlane.xlu0 %381
    %v383 = vsel %vm250, %v377, -inf
    %384 = vmax.xlane.f32.xlu0 %v383
    %v385 = vpop.xlane.xlu0 %384
    %v386 = vsel %vm250, %v378, -inf
    %387 = vmax.xlane.f32.xlu0 %v386
    %v388 = vpop.xlane.xlu0 %387
    %v389 = vsel %vm250, %v379, -inf
    %390 = vmax.xlane.f32.xlu0 %v389
    %v391 = vpop.xlane.xlu0 %390
    %v392 = vsub.f32 %v376, %v382
    %v393 = vsub.f32 %v377, %v385
    %v394 = vsub.f32 %v378, %v388
    %v395 = vsub.f32 %v379, %v391
    %v396 = vmul.f32 %v392, 1.442695
    %v397 = vpow.pop %v396
    %v398 = vmul.f32 %v393, 1.442695
    %v399 = vpow.pop %v398
    %v400 = vmul.f32 %v394, 1.442695
    %v401 = vpow.pop %v400
    %v402 = vmul.f32 %v395, 1.442695
    %v403 = vpow.pop %v402
    %v404 = vsel %vm250, %v397, 0.0
    %405 = vadd.xlane.f32.xlu0 %v404
    %v406 = vpop.xlane.xlu0 %405
    %v407 = vsel %vm250, %v399, 0.0
    %408 = vadd.xlane.f32.xlu0 %v407
    %v409 = vpop.xlane.xlu0 %408
    %v410 = vsel %vm250, %v401, 0.0
    %411 = vadd.xlane.f32.xlu0 %v410
    %v412 = vpop.xlane.xlu0 %411
    %v413 = vsel %vm250, %v403, 0.0
    %414 = vadd.xlane.f32.xlu0 %v413
    %v415 = vpop.xlane.xlu0 %414
    %v416 = vrcp.pop %v406
    %v417 = vrcp.pop %v409
    %v418 = vrcp.pop %v412
    %v419 = vrcp.pop %v415
    %v420 = vmul.f32 %v397, %v416
    %v421 = vmul.f32 %v399, %v417
    %v422 = vmul.f32 %v401, %v418
    %v423 = vmul.f32 %v403, %v419
    %v424 = vpack.c.bf16 %v421, %v420
    %v425 = vpack.c.bf16 %v423, %v422
    %426 = vrot.lane.b32.xlu0 %v303, 64
    %v427 = vpop.permute.xlu0 %426
    %428 = vrot.lane.b32.xlu0 %v304, 64
    %v429 = vpop.permute.xlu0 %428
    %v433 = vsel %vm250, %v424, 0
    %v436 = vsel %vm250, %v425, 0
    %438 = vmatprep.subr.bf16.mxu0 0
    %439 = vmatpush1.bf16.msra.mxu0 %v427
    %440 = vmatprep.subr.bf16.mxu0 0
    %441 = vmatpush1.bf16.msra.mxu0 %v429
    %442 = vmatprep.subr.bf16.mxu0 0
    %443 = vmatpush1.bf16.msra.mxu0 0
    %444 = vmatprep.subr.bf16.mxu0 0
    %445 = vmatpush1.bf16.msra.mxu0 0
    %446 = vmatprep.subr.bf16.mxu0 0
    %447 = vmatpush1.bf16.msra.mxu0 0
    %448 = vmatprep.subr.bf16.mxu0 0
    %449 = vmatpush1.bf16.msra.mxu0 0
    %450 = vmatprep.subr.bf16.mxu0 0
    %451 = vmatpush1.bf16.msra.mxu0 0
    %452 = vmatprep.subr.bf16.mxu0 0
    %453 = vmatpush1.bf16.msra.mxu0 0
    %454 = vmatprep.subr.bf16.mxu0 0
    %455 = vmatpush1.bf16.msra.mxu0 0
    %456 = vmatprep.subr.bf16.mxu0 0
    %457 = vmatpush1.bf16.msra.mxu0 0
    %458 = vmatprep.subr.bf16.mxu0 0
    %459 = vmatpush1.bf16.msra.mxu0 0
    %460 = vmatprep.subr.bf16.mxu0 0
    %461 = vmatpush1.bf16.msra.mxu0 0
    %462 = vmatprep.subr.bf16.mxu0 0
    %463 = vmatpush1.bf16.msra.mxu0 0
    %464 = vmatprep.subr.bf16.mxu0 0
    %465 = vmatpush1.bf16.msra.mxu0 0
    %466 = vmatprep.subr.bf16.mxu0 0
    %467 = vmatpush1.bf16.msra.mxu0 0
    %468 = vmatprep.subr.bf16.mxu0 0
    %469 = vmatpush1.bf16.msra.mxu0 0
    %470 = vmatprep.mubr.bf16.mxu0 0
    %471 = vmatmul.mubr.bf16.gmra.mrb[0].mxu0 %v433
    %v472 = vpop.f32.mrb[0].mxu0
    %v473 = vadd.f32 0.0, %v472
    %v474 = vpop.f32.mrb[0].mxu0
    %v475 = vpop.f32.mrb[0].mxu0
    %v476 = vadd.f32 0.0, %v475
    %v477 = vpop.f32.mrb[0].mxu0
    %478 = vmatprep.mubr.bf16.mxu0 0
    %479 = vmatmul.mubr.bf16.gmra.mrb[0].mxu0 %v436
    %v480 = vpop.f32.mrb[0].mxu0
    %v481 = vadd.f32 0.0, %v480
    %v482 = vpop.f32.mrb[0].mxu0
    %v483 = vpop.f32.mrb[0].mxu0
    %v484 = vadd.f32 0.0, %v483
    %v485 = vpop.f32.mrb[0].mxu0
    %486 = vdwg.mxu0
    %489 = vrot.lane.b32.xlu0 %v481, 16
    %v490 = vpop.permute.xlu0 %489
    %491 = vrot.lane.b32.xlu0 %v484, 16
    %v492 = vpop.permute.xlu0 %491
    %v495 = vsel %vm176, %v473, %v490
    %v496 = vsel %vm176, %v476, %v492
    %v497 = vpack.c.bf16 %v496, %v495
    %v498 = vlaneseq
    %v499 = vshrl.u32 %v498, 7
    %v500 = vsub.s32 1, %v499
    %v501 = vrot.slane %v203, %v500
    %v506 = vunpack.c.l.b16 %v209
    %v507 = vunpack.c.l.b16 %v210
    %v508 = vunpack.c.l.b16 %v211
    %v509 = vunpack.c.l.b16 %v212
    %v510 = vpack.c.b16 %v507, %v506
    %v511 = vpack.c.b16 %v509, %v508
    %v515 = vsel %vm250, %v497, 0
    %517 = vmatprep.subr.bf16.mxu0 0
    %518 = vmatpush1.bf16.msra.mxu0 %v510
    %519 = vmatprep.subr.bf16.mxu0 0
    %520 = vmatpush1.bf16.msra.mxu0 %v511
    %521 = vmatprep.subr.bf16.mxu0 0
    %522 = vmatpush1.bf16.msra.mxu0 0
    %523 = vmatprep.subr.bf16.mxu0 0
    %524 = vmatpush1.bf16.msra.mxu0 0
    %525 = vmatprep.subr.bf16.mxu0 0
    %526 = vmatpush1.bf16.msra.mxu0 0
    %527 = vmatprep.subr.bf16.mxu0 0
    %528 = vmatpush1.bf16.msra.mxu0 0
    %529 = vmatprep.subr.bf16.mxu0 0
    %530 = vmatpush1.bf16.msra.mxu0 0
    %531 = vmatprep.subr.bf16.mxu0 0
    %532 = vmatpush1.bf16.msra.mxu0 0
    %533 = vmatprep.subr.bf16.mxu0 0
    %534 = vmatpush1.bf16.msra.mxu0 0
    %535 = vmatprep.subr.bf16.mxu0 0
    %536 = vmatpush1.bf16.msra.mxu0 0
    %537 = vmatprep.subr.bf16.mxu0 0
    %538 = vmatpush1.bf16.msra.mxu0 0
    %539 = vmatprep.subr.bf16.mxu0 0
    %540 = vmatpush1.bf16.msra.mxu0 0
    %541 = vmatprep.subr.bf16.mxu0 0
    %542 = vmatpush1.bf16.msra.mxu0 0
    %543 = vmatprep.subr.bf16.mxu0 0
    %544 = vmatpush1.bf16.msra.mxu0 0
    %545 = vmatprep.subr.bf16.mxu0 0
    %546 = vmatpush1.bf16.msra.mxu0 0
    %547 = vmatprep.subr.bf16.mxu0 0
    %548 = vmatpush1.bf16.msra.mxu0 0
    %549 = vmatprep.mubr.bf16.mxu0 0
    %550 = vmatmul.mubr.bf16.gmra.mrb[0].mxu0 %v515
    %v551 = vpop.f32.mrb[0].mxu0
    %v552 = vadd.f32 %v501, %v551
    %v553 = vpop.f32.mrb[0].mxu0
    %v554 = vpop.f32.mrb[0].mxu0
    %v555 = vadd.f32 %v501, %v554
    %v556 = vpop.f32.mrb[0].mxu0
    %557 = vdwg.mxu0
    %v558 = vadd.f32 %v552, %v133
    %v559 = vadd.f32 %v555, %v136
    %v560 = vsel %vm250, %v558, 0.0
    %561 = vadd.xlane.f32.xlu0 %v560
    %v562 = vpop.xlane.xlu0 %561
    %v563 = vsel %vm250, %v559, 0.0
    %564 = vadd.xlane.f32.xlu0 %v563
    %v565 = vpop.xlane.xlu0 %564
    %v566 = vrcp.pop 32.0
    %v567 = vmul.f32 %v562, %v566
    %v568 = vmul.f32 %v565, %v566
    %v569 = vsub.f32 %v558, %v567
    %v570 = vsub.f32 %v559, %v568
    %v571 = vmul.f32 %v569, %v569
    %v572 = vmul.f32 %v570, %v570
    %v573 = vsel %vm250, %v571, 0.0
    %574 = vadd.xlane.f32.xlu0 %v573
    %v575 = vpop.xlane.xlu0 %574
    %v576 = vsel %vm250, %v572, 0.0
    %577 = vadd.xlane.f32.xlu0 %v576
    %v578 = vpop.xlane.xlu0 %577
    %v579 = vmul.f32 %v575, %v566
    %v580 = vmul.f32 %v578, %v566
    %v581 = vadd.f32 %v579, 1e-05
    %v582 = vadd.f32 %v580, 1e-05
    %v583 = vrsqrt.pop %v581
    %v584 = vrsqrt.pop %v582
    %v585 = vmul.f32 %v569, %v583
    %v586 = vmul.f32 %v570, %v584
    %v587 = vlaneseq
    %v588 = vshrl.u32 %v587, 7
    %v589 = vsub.s32 2, %v588
    %v590 = vrot.slane %v203, %v589
    %v591 = vmul.f32 %v585, %v590
    %v592 = vmul.f32 %v586, %v590
    %v593 = vlaneseq
    %v594 = vshrl.u32 %v593, 7
    %v595 = vsub.s32 3, %v594
    %v596 = vrot.slane %v203, %v595
    %v597 = vadd.f32 %v591, %v596
    %v598 = vadd.f32 %v592, %v596
    %v600 = vrot.slane %v598, 7
    %vm603 = vcmask 1040384
    %v604 = vrot.slane %v597, 7
    %v605 = vsel %vm603, %v604, %v600
    %v608 = vsel %vm603, %v600, %v604
    %v609 = vsel %vm199, 1, 0
    %v610 = vsel %vm200, 1, 0
    %vm611 = vcmp.eq.s32.totalorder %v609, 1
    %vm612 = vcmp.eq.s32.totalorder %v610, 1
    %v613 = vsel %vm611, %v608, 0.0
    %v614 = vsel %vm612, %v605, 0.0
    %vm615 = vcmask 1046528
    %v616 = vrot.slane %v597, 1
    %v617 = vrot.slane %v598, 1
    %v618 = vsel %vm615, %v616, %v617
    %v622 = vsel %vm615, %v617, %v616
    %v623 = vsel %vm201, 1, 0
    %v624 = vsel %vm202, 1, 0
    %vm625 = vcmp.eq.s32.totalorder %v623, 1
    %vm626 = vcmp.eq.s32.totalorder %v624, 1
    %v627 = vsel %vm625, %v618, 0.0
    %v628 = vsel %vm626, %v622, 0.0
    %629 = vrot.lane.b32.xlu0 %v597, 32
    %v630 = vpop.permute.xlu0 %629
    %631 = vrot.lane.b32.xlu0 %v598, 32
    %v632 = vpop.permute.xlu0 %631
    %637 = vrot.lane.b32.xlu0 %v627, 64
    %v638 = vpop.permute.xlu0 %637
    %639 = vrot.lane.b32.xlu0 %v628, 64
    %v640 = vpop.permute.xlu0 %639
    %v643 = vsel %vm250, %v613, %v630
    %v644 = vsel %vm250, %v614, %v632
    %v645 = vsel %vm94, %v643, %v638
    %v646 = vsel %vm94, %v644, %v640
    %v647 = vpack.c.bf16 %v646, %v645
    %v648 = vlaneseq
    %v649 = vshrl.u32 %v648, 7
    %v650 = vsub.s32 4, %v649
    %v651 = vrot.slane %v203, %v650
    %v664 = vunpack.c.l.b16 %v213
    %v665 = vunpack.c.l.b16 %v214
    %v666 = vunpack.c.l.b16 %v215
    %v667 = vunpack.c.l.b16 %v216
    %v668 = vunpack.c.l.b16 %v217
    %v669 = vunpack.c.l.b16 %v218
    %v670 = vunpack.c.l.b16 %v219
    %v671 = vunpack.c.l.b16 %v220
    %v672 = vunpack.c.l.b16 %v221
    %v673 = vunpack.c.l.b16 %v222
    %v674 = vunpack.c.l.b16 %v223
    %v675 = vunpack.c.l.b16 %v224
    %v676 = vpack.c.b16 %v665, %v664
    %v677 = vpack.c.b16 %v667, %v666
    %v678 = vpack.c.b16 %v669, %v668
    %v679 = vpack.c.b16 %v671, %v670
    %v680 = vpack.c.b16 %v673, %v672
    %v681 = vpack.c.b16 %v675, %v674
    %vm688 = vcmask 785408
    %v690 = vsel %vm688, %v647, 0
    %692 = vmatprep.subr.bf16.mxu0 0
    %693 = vmatpush1.bf16.msra.mxu0 %v676
    %694 = vmatprep.subr.bf16.mxu0 0
    %695 = vmatpush1.bf16.msra.mxu0 %v677
    %696 = vmatprep.subr.bf16.mxu0 0
    %697 = vmatpush1.bf16.msra.mxu0 %v678
    %698 = vmatprep.subr.bf16.mxu0 0
    %699 = vmatpush1.bf16.msra.mxu0 %v679
    %700 = vmatprep.subr.bf16.mxu0 0
    %701 = vmatpush1.bf16.msra.mxu0 %v680
    %702 = vmatprep.subr.bf16.mxu0 0
    %703 = vmatpush1.bf16.msra.mxu0 %v681
    %704 = vmatprep.subr.bf16.mxu0 0
    %705 = vmatpush1.bf16.msra.mxu0 0
    %706 = vmatprep.subr.bf16.mxu0 0
    %707 = vmatpush1.bf16.msra.mxu0 0
    %708 = vmatprep.subr.bf16.mxu0 0
    %709 = vmatpush1.bf16.msra.mxu0 0
    %710 = vmatprep.subr.bf16.mxu0 0
    %711 = vmatpush1.bf16.msra.mxu0 0
    %712 = vmatprep.subr.bf16.mxu0 0
    %713 = vmatpush1.bf16.msra.mxu0 0
    %714 = vmatprep.subr.bf16.mxu0 0
    %715 = vmatpush1.bf16.msra.mxu0 0
    %716 = vmatprep.subr.bf16.mxu0 0
    %717 = vmatpush1.bf16.msra.mxu0 0
    %718 = vmatprep.subr.bf16.mxu0 0
    %719 = vmatpush1.bf16.msra.mxu0 0
    %720 = vmatprep.subr.bf16.mxu0 0
    %721 = vmatpush1.bf16.msra.mxu0 0
    %722 = vmatprep.subr.bf16.mxu0 0
    %723 = vmatpush1.bf16.msra.mxu0 0
    %724 = vmatprep.mubr.bf16.mxu0 0
    %725 = vmatmul.mubr.bf16.gmra.mrb[0].mxu0 %v690
    %v726 = vpop.f32.mrb[0].mxu0
    %v727 = vadd.f32 %v651, %v726
    %v728 = vpop.f32.mrb[0].mxu0
    %v729 = vpop.f32.mrb[0].mxu0
    %v730 = vadd.f32 %v651, %v729
    %v731 = vpop.f32.mrb[0].mxu0
    %732 = vdwg.mxu0
    %v733 = vmax.f32 %v727, 0.0
    %v734 = vmax.f32 %v730, 0.0
    %v735 = vpack.c.bf16 %v734, %v733
    %v736 = vlaneseq
    %v737 = vshrl.u32 %v736, 7
    %v738 = vsub.s32 5, %v737
    %v739 = vrot.slane %v203, %v738
    %v748 = vunpack.c.l.b16 %v225
    %v749 = vunpack.c.l.b16 %v226
    %v750 = vunpack.c.l.b16 %v227
    %v751 = vunpack.c.l.b16 %v228
    %v752 = vunpack.c.l.b16 %v229
    %v753 = vunpack.c.l.b16 %v230
    %v754 = vunpack.c.l.b16 %v231
    %v755 = vunpack.c.l.b16 %v232
    %v756 = vpack.c.b16 %v749, %v748
    %v757 = vpack.c.b16 %v751, %v750
    %v758 = vpack.c.b16 %v753, %v752
    %v759 = vpack.c.b16 %v755, %v754
    %v765 = vsel %vm94, %v735, 0
    %767 = vmatprep.subr.bf16.mxu0 0
    %768 = vmatpush1.bf16.msra.mxu0 %v756
    %769 = vmatprep.subr.bf16.mxu0 0
    %770 = vmatpush1.bf16.msra.mxu0 %v757
    %771 = vmatprep.subr.bf16.mxu0 0
    %772 = vmatpush1.bf16.msra.mxu0 %v758
    %773 = vmatprep.subr.bf16.mxu0 0
    %774 = vmatpush1.bf16.msra.mxu0 %v759
    %775 = vmatprep.subr.bf16.mxu0 0
    %776 = vmatpush1.bf16.msra.mxu0 0
    %777 = vmatprep.subr.bf16.mxu0 0
    %778 = vmatpush1.bf16.msra.mxu0 0
    %779 = vmatprep.subr.bf16.mxu0 0
    %780 = vmatpush1.bf16.msra.mxu0 0
    %781 = vmatprep.subr.bf16.mxu0 0
    %782 = vmatpush1.bf16.msra.mxu0 0
    %783 = vmatprep.subr.bf16.mxu0 0
    %784 = vmatpush1.bf16.msra.mxu0 0
    %785 = vmatprep.subr.bf16.mxu0 0
    %786 = vmatpush1.bf16.msra.mxu0 0
    %787 = vmatprep.subr.bf16.mxu0 0
    %788 = vmatpush1.bf16.msra.mxu0 0
    %789 = vmatprep.subr.bf16.mxu0 0
    %790 = vmatpush1.bf16.msra.mxu0 0
    %791 = vmatprep.subr.bf16.mxu0 0
    %792 = vmatpush1.bf16.msra.mxu0 0
    %793 = vmatprep.subr.bf16.mxu0 0
    %794 = vmatpush1.bf16.msra.mxu0 0
    %795 = vmatprep.subr.bf16.mxu0 0
    %796 = vmatpush1.bf16.msra.mxu0 0
    %797 = vmatprep.subr.bf16.mxu0 0
    %798 = vmatpush1.bf16.msra.mxu0 0
    %799 = vmatprep.mubr.bf16.mxu0 0
    %800 = vmatmul.mubr.bf16.gmra.mrb[0].mxu0 %v765
    %v801 = vpop.f32.mrb[0].mxu0
    %v802 = vadd.f32 %v739, %v801
    %v803 = vpop.f32.mrb[0].mxu0
    %v804 = vpop.f32.mrb[0].mxu0
    %v805 = vadd.f32 %v739, %v804
    %v806 = vpop.f32.mrb[0].mxu0
    %807 = vdwg.mxu0
    %v808 = vadd.f32 %v802, %v597
    %v809 = vadd.f32 %v805, %v598
    %v810 = vsel %vm250, %v808, 0.0
    %811 = vadd.xlane.f32.xlu0 %v810
    %v812 = vpop.xlane.xlu0 %811
    %v813 = vsel %vm250, %v809, 0.0
    %814 = vadd.xlane.f32.xlu0 %v813
    %v815 = vpop.xlane.xlu0 %814
    %v816 = vmul.f32 %v812, %v566
    %v817 = vmul.f32 %v815, %v566
    %v818 = vsub.f32 %v808, %v816
    %v819 = vsub.f32 %v809, %v817
    %v820 = vmul.f32 %v818, %v818
    %v821 = vmul.f32 %v819, %v819
    %v822 = vsel %vm250, %v820, 0.0
    %823 = vadd.xlane.f32.xlu0 %v822
    %v824 = vpop.xlane.xlu0 %823
    %v825 = vsel %vm250, %v821, 0.0
    %826 = vadd.xlane.f32.xlu0 %v825
    %v827 = vpop.xlane.xlu0 %826
    %v828 = vmul.f32 %v824, %v566
    %v829 = vmul.f32 %v827, %v566
    %v830 = vadd.f32 %v828, 1e-05
    %v831 = vadd.f32 %v829, 1e-05
    %v832 = vrsqrt.pop %v830
    %v833 = vrsqrt.pop %v831
    %v834 = vmul.f32 %v818, %v832
    %v835 = vmul.f32 %v819, %v833
    %v836 = vlaneseq
    %v837 = vshrl.u32 %v836, 7
    %v838 = vsub.s32 6, %v837
    %v839 = vrot.slane %v203, %v838
    %v840 = vmul.f32 %v834, %v839
    %v841 = vmul.f32 %v835, %v839
    %v842 = vlaneseq
    %v843 = vshrl.u32 %v842, 7
    %v844 = vsub.s32 7, %v843
    %v845 = vrot.slane %v203, %v844
    %v846 = vadd.f32 %v840, %v845
    %v847 = vadd.f32 %v841, %v845
    %v848 = vld [vmem:[#allocation2 + $0x90] sm:$0xf]
    %v849 = vld [vmem:[#allocation2 + $0x94] sm:$0xf]
    %v850 = vld [vmem:[#allocation2 + $0x98] sm:$0xf]
    %v851 = vld [vmem:[#allocation2 + $0x9c] sm:$0xf]
    %v852 = vld [vmem:[#allocation2 + $0xa0] sm:$0xf]
    %v853 = vld [vmem:[#allocation2 + $0xa4] sm:$0xf]
    %v854 = vld [vmem:[#allocation2 + $0xa8] sm:$0xf]
    %v855 = vld [vmem:[#allocation2 + $0xac] sm:$0xf]
    %v856 = vld [vmem:[#allocation2 + $0xb0] sm:$0xf]
    %v857 = vld [vmem:[#allocation2 + $0xb4] sm:$0xf]
    %v858 = vld [vmem:[#allocation2 + $0xb8] sm:$0xf]
    %v859 = vld [vmem:[#allocation2 + $0xbc] sm:$0xf]
    %v860 = vld [vmem:[#allocation2 + $0xc0] sm:$0xf]
    %v861 = vld [vmem:[#allocation2 + $0xc4] sm:$0xf]
    %v862 = vld [vmem:[#allocation2 + $0xc8] sm:$0xf]
    %v863 = vld [vmem:[#allocation2 + $0xcc] sm:$0xf]
    %v864 = vld [vmem:[#allocation2 + $0xd0] sm:$0xf]
    %v865 = vld [vmem:[#allocation2 + $0xd4] sm:$0xf]
    %v866 = vld [vmem:[#allocation2 + $0xd8] sm:$0xf]
    %v867 = vld [vmem:[#allocation2 + $0xdc] sm:$0xf]
    %v868 = vld [vmem:[#allocation2 + $0xe0] sm:$0xf]
    %v869 = vld [vmem:[#allocation2 + $0xe4] sm:$0xf]
    %v870 = vld [vmem:[#allocation2 + $0xe8] sm:$0xf]
    %v871 = vld [vmem:[#allocation2 + $0xec] sm:$0xf]
    %v872 = vld [vmem:[#allocation2 + $0xf0] sm:$0xf]
    %v873 = vld [vmem:[#allocation2 + $0xf4] sm:$0xf]
    %v874 = vld [vmem:[#allocation2 + $0xf8] sm:$0xf]
    %v875 = vld [vmem:[#allocation2 + $0xfc] sm:$0xf]
    %v876 = vpack.c.bf16 %v847, %v846
    %v877 = vlaneseq
    %v878 = vshrl.u32 %v877, 7
    %v879 = vsub.s32 0, %v878
    %v880 = vrot.slane %v204, %v879
    %v885 = vunpack.c.l.b16 %v848
    %v886 = vunpack.c.l.b16 %v849
    %v887 = vunpack.c.l.b16 %v850
    %v888 = vunpack.c.l.b16 %v851
    %v889 = vpack.c.b16 %v886, %v885
    %v890 = vpack.c.b16 %v888, %v887
    %v894 = vsel %vm250, %v876, 0
    %896 = vmatprep.subr.bf16.mxu0 0
    %897 = vmatpush1.bf16.msra.mxu0 %v889
    %898 = vmatprep.subr.bf16.mxu0 0
    %899 = vmatpush1.bf16.msra.mxu0 %v890
    %900 = vmatprep.subr.bf16.mxu0 0
    %901 = vmatpush1.bf16.msra.mxu0 0
    %902 = vmatprep.subr.bf16.mxu0 0
    %903 = vmatpush1.bf16.msra.mxu0 0
    %904 = vmatprep.subr.bf16.mxu0 0
    %905 = vmatpush1.bf16.msra.mxu0 0
    %906 = vmatprep.subr.bf16.mxu0 0
    %907 = vmatpush1.bf16.msra.mxu0 0
    %908 = vmatprep.subr.bf16.mxu0 0
    %909 = vmatpush1.bf16.msra.mxu0 0
    %910 = vmatprep.subr.bf16.mxu0 0
    %911 = vmatpush1.bf16.msra.mxu0 0
    %912 = vmatprep.subr.bf16.mxu0 0
    %913 = vmatpush1.bf16.msra.mxu0 0
    %914 = vmatprep.subr.bf16.mxu0 0
    %915 = vmatpush1.bf16.msra.mxu0 0
    %916 = vmatprep.subr.bf16.mxu0 0
    %917 = vmatpush1.bf16.msra.mxu0 0
    %918 = vmatprep.subr.bf16.mxu0 0
    %919 = vmatpush1.bf16.msra.mxu0 0
    %920 = vmatprep.subr.bf16.mxu0 0
    %921 = vmatpush1.bf16.msra.mxu0 0
    %922 = vmatprep.subr.bf16.mxu0 0
    %923 = vmatpush1.bf16.msra.mxu0 0
    %924 = vmatprep.subr.bf16.mxu0 0
    %925 = vmatpush1.bf16.msra.mxu0 0
    %926 = vmatprep.subr.bf16.mxu0 0
    %927 = vmatpush1.bf16.msra.mxu0 0
    %928 = vmatprep.mubr.bf16.mxu0 0
    %929 = vmatmul.mubr.bf16.gmra.mrb[0].mxu0 %v894
    %v930 = vpop.f32.mrb[0].mxu0
    %v931 = vadd.f32 %v880, %v930
    %v932 = vpop.f32.mrb[0].mxu0
    %v933 = vpop.f32.mrb[0].mxu0
    %v934 = vadd.f32 %v880, %v933
    %v935 = vpop.f32.mrb[0].mxu0
    %936 = vdwg.mxu0
    %939 = vrot.lane.b32.xlu0 %v931, 112
    %v940 = vpop.permute.xlu0 %939
    %941 = vrot.lane.b32.xlu0 %v934, 112
    %v942 = vpop.permute.xlu0 %941
    %v945 = vpack.c.bf16 %v934, %v931
    %v946 = vpack.c.bf16 %v942, %v940
    %949 = vrot.lane.b32.xlu0 %v945, 96
    %v950 = vpop.permute.xlu0 %949
    %951 = vrot.lane.b32.xlu0 %v946, 96
    %v952 = vpop.permute.xlu0 %951
    %v954 = vsel %vm176, %v945, 0
    %v957 = vsel %vm176, %v946, 0
    %v960 = vsel %vm176, %v950, 0
    %v963 = vsel %vm176, %v952, 0
    %965 = vmatprep.subr.bf16.mxu0 0
    %966 = vmatpush1.bf16.xpose.msra.mxu0 %v960
    %967 = vmatprep.subr.bf16.mxu0 0
    %968 = vmatpush1.bf16.xpose.msra.mxu0 %v963
    %969 = vmatprep.subr.bf16.mxu0 0
    %970 = vmatpush1.bf16.xpose.msra.mxu0 0
    %971 = vmatprep.subr.bf16.mxu0 0
    %972 = vmatpush1.bf16.xpose.msra.mxu0 0
    %973 = vmatprep.subr.bf16.mxu0 0
    %974 = vmatpush1.bf16.xpose.msra.mxu0 0
    %975 = vmatprep.subr.bf16.mxu0 0
    %976 = vmatpush1.bf16.xpose.msra.mxu0 0
    %977 = vmatprep.subr.bf16.mxu0 0
    %978 = vmatpush1.bf16.xpose.msra.mxu0 0
    %979 = vmatprep.subr.bf16.mxu0 0
    %980 = vmatpush1.bf16.xpose.msra.mxu0 0
    %981 = vmatprep.subr.bf16.mxu0 0
    %982 = vmatpush1.bf16.xpose.msra.mxu0 0
    %983 = vmatprep.subr.bf16.mxu0 0
    %984 = vmatpush1.bf16.xpose.msra.mxu0 0
    %985 = vmatprep.subr.bf16.mxu0 0
    %986 = vmatpush1.bf16.xpose.msra.mxu0 0
    %987 = vmatprep.subr.bf16.mxu0 0
    %988 = vmatpush1.bf16.xpose.msra.mxu0 0
    %989 = vmatprep.subr.bf16.mxu0 0
    %990 = vmatpush1.bf16.xpose.msra.mxu0 0
    %991 = vmatprep.subr.bf16.mxu0 0
    %992 = vmatpush1.bf16.xpose.msra.mxu0 0
    %993 = vmatprep.subr.bf16.mxu0 0
    %994 = vmatpush1.bf16.xpose.msra.mxu0 0
    %995 = vmatprep.subr.bf16.mxu0 0
    %996 = vmatpush1.bf16.xpose.msra.mxu0 0
    %997 = vmatprep.mubr.bf16.mxu0 0
    %998 = vmatmul.mubr.bf16.gmra.mrb[0].mxu0 %v954
    %v999 = vpop.f32.mrb[0].mxu0
    %v1000 = vadd.f32 0.0, %v999
    %v1001 = vpop.f32.mrb[0].mxu0
    %v1002 = vpop.f32.mrb[0].mxu0
    %v1003 = vadd.f32 0.0, %v1002
    %v1004 = vpop.f32.mrb[0].mxu0
    %1005 = vmatprep.mubr.bf16.mxu0 0
    %1006 = vmatmul.mubr.bf16.gmra.mrb[0].mxu0 %v957
    %v1007 = vpop.f32.mrb[0].mxu0
    %v1008 = vadd.f32 0.0, %v1007
    %v1009 = vpop.f32.mrb[0].mxu0
    %v1010 = vpop.f32.mrb[0].mxu0
    %v1011 = vadd.f32 0.0, %v1010
    %v1012 = vpop.f32.mrb[0].mxu0
    %1013 = vdwg.mxu0
    %v1014 = vmul.f32 %v1000, 0.25
    %v1015 = vmul.f32 %v1003, 0.25
    %v1016 = vmul.f32 %v1008, 0.25
    %v1017 = vmul.f32 %v1011, 0.25
    %v1018 = vadd.f32 %v1014, %v193
    %v1019 = vadd.f32 %v1015, %v194
    %v1020 = vadd.f32 %v1016, %v195
    %v1021 = vadd.f32 %v1017, %v196
    %v1022 = vsel %vm250, %v1018, -inf
    %1023 = vmax.xlane.f32.xlu0 %v1022
    %v1024 = vpop.xlane.xlu0 %1023
    %v1025 = vsel %vm250, %v1019, -inf
    %1026 = vmax.xlane.f32.xlu0 %v1025
    %v1027 = vpop.xlane.xlu0 %1026
    %v1028 = vsel %vm250, %v1020, -inf
    %1029 = vmax.xlane.f32.xlu0 %v1028
    %v1030 = vpop.xlane.xlu0 %1029
    %v1031 = vsel %vm250, %v1021, -inf
    %1032 = vmax.xlane.f32.xlu0 %v1031
    %v1033 = vpop.xlane.xlu0 %1032
    %v1034 = vsub.f32 %v1018, %v1024
    %v1035 = vsub.f32 %v1019, %v1027
    %v1036 = vsub.f32 %v1020, %v1030
    %v1037 = vsub.f32 %v1021, %v1033
    %v1038 = vmul.f32 %v1034, 1.442695
    %v1039 = vpow.pop %v1038
    %v1040 = vmul.f32 %v1035, 1.442695
    %v1041 = vpow.pop %v1040
    %v1042 = vmul.f32 %v1036, 1.442695
    %v1043 = vpow.pop %v1042
    %v1044 = vmul.f32 %v1037, 1.442695
    %v1045 = vpow.pop %v1044
    %v1046 = vsel %vm250, %v1039, 0.0
    %1047 = vadd.xlane.f32.xlu0 %v1046
    %v1048 = vpop.xlane.xlu0 %1047
    %v1049 = vsel %vm250, %v1041, 0.0
    %1050 = vadd.xlane.f32.xlu0 %v1049
    %v1051 = vpop.xlane.xlu0 %1050
    %v1052 = vsel %vm250, %v1043, 0.0
    %1053 = vadd.xlane.f32.xlu0 %v1052
    %v1054 = vpop.xlane.xlu0 %1053
    %v1055 = vsel %vm250, %v1045, 0.0
    %1056 = vadd.xlane.f32.xlu0 %v1055
    %v1057 = vpop.xlane.xlu0 %1056
    %v1058 = vrcp.pop %v1048
    %v1059 = vrcp.pop %v1051
    %v1060 = vrcp.pop %v1054
    %v1061 = vrcp.pop %v1057
    %v1062 = vmul.f32 %v1039, %v1058
    %v1063 = vmul.f32 %v1041, %v1059
    %v1064 = vmul.f32 %v1043, %v1060
    %v1065 = vmul.f32 %v1045, %v1061
    %v1066 = vpack.c.bf16 %v1063, %v1062
    %v1067 = vpack.c.bf16 %v1065, %v1064
    %1068 = vrot.lane.b32.xlu0 %v945, 64
    %v1069 = vpop.permute.xlu0 %1068
    %1070 = vrot.lane.b32.xlu0 %v946, 64
    %v1071 = vpop.permute.xlu0 %1070
    %v1075 = vsel %vm250, %v1066, 0
    %v1078 = vsel %vm250, %v1067, 0
    %1080 = vmatprep.subr.bf16.mxu0 0
    %1081 = vmatpush1.bf16.msra.mxu0 %v1069
    %1082 = vmatprep.subr.bf16.mxu0 0
    %1083 = vmatpush1.bf16.msra.mxu0 %v1071
    %1084 = vmatprep.subr.bf16.mxu0 0
    %1085 = vmatpush1.bf16.msra.mxu0 0
    %1086 = vmatprep.subr.bf16.mxu0 0
    %1087 = vmatpush1.bf16.msra.mxu0 0
    %1088 = vmatprep.subr.bf16.mxu0 0
    %1089 = vmatpush1.bf16.msra.mxu0 0
    %1090 = vmatprep.subr.bf16.mxu0 0
    %1091 = vmatpush1.bf16.msra.mxu0 0
    %1092 = vmatprep.subr.bf16.mxu0 0
    %1093 = vmatpush1.bf16.msra.mxu0 0
    %1094 = vmatprep.subr.bf16.mxu0 0
    %1095 = vmatpush1.bf16.msra.mxu0 0
    %1096 = vmatprep.subr.bf16.mxu0 0
    %1097 = vmatpush1.bf16.msra.mxu0 0
    %1098 = vmatprep.subr.bf16.mxu0 0
    %1099 = vmatpush1.bf16.msra.mxu0 0
    %1100 = vmatprep.subr.bf16.mxu0 0
    %1101 = vmatpush1.bf16.msra.mxu0 0
    %1102 = vmatprep.subr.bf16.mxu0 0
    %1103 = vmatpush1.bf16.msra.mxu0 0
    %1104 = vmatprep.subr.bf16.mxu0 0
    %1105 = vmatpush1.bf16.msra.mxu0 0
    %1106 = vmatprep.subr.bf16.mxu0 0
    %1107 = vmatpush1.bf16.msra.mxu0 0
    %1108 = vmatprep.subr.bf16.mxu0 0
    %1109 = vmatpush1.bf16.msra.mxu0 0
    %1110 = vmatprep.subr.bf16.mxu0 0
    %1111 = vmatpush1.bf16.msra.mxu0 0
    %1112 = vmatprep.mubr.bf16.mxu0 0
    %1113 = vmatmul.mubr.bf16.gmra.mrb[0].mxu0 %v1075
    %v1114 = vpop.f32.mrb[0].mxu0
    %v1115 = vadd.f32 0.0, %v1114
    %v1116 = vpop.f32.mrb[0].mxu0
    %v1117 = vpop.f32.mrb[0].mxu0
    %v1118 = vadd.f32 0.0, %v1117
    %v1119 = vpop.f32.mrb[0].mxu0
    %1120 = vmatprep.mubr.bf16.mxu0 0
    %1121 = vmatmul.mubr.bf16.gmra.mrb[0].mxu0 %v1078
    %v1122 = vpop.f32.mrb[0].mxu0
    %v1123 = vadd.f32 0.0, %v1122
    %v1124 = vpop.f32.mrb[0].mxu0
    %v1125 = vpop.f32.mrb[0].mxu0
    %v1126 = vadd.f32 0.0, %v1125
    %v1127 = vpop.f32.mrb[0].mxu0
    %1128 = vdwg.mxu0
    %1131 = vrot.lane.b32.xlu0 %v1123, 16
    %v1132 = vpop.permute.xlu0 %1131
    %1133 = vrot.lane.b32.xlu0 %v1126, 16
    %v1134 = vpop.permute.xlu0 %1133
    %v1137 = vsel %vm176, %v1115, %v1132
    %v1138 = vsel %vm176, %v1118, %v1134
    %v1139 = vpack.c.bf16 %v1138, %v1137
    %v1140 = vlaneseq
    %v1141 = vshrl.u32 %v1140, 7
    %v1142 = vsub.s32 1, %v1141
    %v1143 = vrot.slane %v204, %v1142
    %v1148 = vunpack.c.l.b16 %v852
    %v1149 = vunpack.c.l.b16 %v853
    %v1150 = vunpack.c.l.b16 %v854
    %v1151 = vunpack.c.l.b16 %v855
    %v1152 = vpack.c.b16 %v1149, %v1148
    %v1153 = vpack.c.b16 %v1151, %v1150
    %v1157 = vsel %vm250, %v1139, 0
    %1159 = vmatprep.subr.bf16.mxu0 0
    %1160 = vmatpush1.bf16.msra.mxu0 %v1152
    %1161 = vmatprep.subr.bf16.mxu0 0
    %1162 = vmatpush1.bf16.msra.mxu0 %v1153
    %1163 = vmatprep.subr.bf16.mxu0 0
    %1164 = vmatpush1.bf16.msra.mxu0 0
    %1165 = vmatprep.subr.bf16.mxu0 0
    %1166 = vmatpush1.bf16.msra.mxu0 0
    %1167 = vmatprep.subr.bf16.mxu0 0
    %1168 = vmatpush1.bf16.msra.mxu0 0
    %1169 = vmatprep.subr.bf16.mxu0 0
    %1170 = vmatpush1.bf16.msra.mxu0 0
    %1171 = vmatprep.subr.bf16.mxu0 0
    %1172 = vmatpush1.bf16.msra.mxu0 0
    %1173 = vmatprep.subr.bf16.mxu0 0
    %1174 = vmatpush1.bf16.msra.mxu0 0
    %1175 = vmatprep.subr.bf16.mxu0 0
    %1176 = vmatpush1.bf16.msra.mxu0 0
    %1177 = vmatprep.subr.bf16.mxu0 0
    %1178 = vmatpush1.bf16.msra.mxu0 0
    %1179 = vmatprep.subr.bf16.mxu0 0
    %1180 = vmatpush1.bf16.msra.mxu0 0
    %1181 = vmatprep.subr.bf16.mxu0 0
    %1182 = vmatpush1.bf16.msra.mxu0 0
    %1183 = vmatprep.subr.bf16.mxu0 0
    %1184 = vmatpush1.bf16.msra.mxu0 0
    %1185 = vmatprep.subr.bf16.mxu0 0
    %1186 = vmatpush1.bf16.msra.mxu0 0
    %1187 = vmatprep.subr.bf16.mxu0 0
    %1188 = vmatpush1.bf16.msra.mxu0 0
    %1189 = vmatprep.subr.bf16.mxu0 0
    %1190 = vmatpush1.bf16.msra.mxu0 0
    %1191 = vmatprep.mubr.bf16.mxu0 0
    %1192 = vmatmul.mubr.bf16.gmra.mrb[0].mxu0 %v1157
    %v1193 = vpop.f32.mrb[0].mxu0
    %v1194 = vadd.f32 %v1143, %v1193
    %v1195 = vpop.f32.mrb[0].mxu0
    %v1196 = vpop.f32.mrb[0].mxu0
    %v1197 = vadd.f32 %v1143, %v1196
    %v1198 = vpop.f32.mrb[0].mxu0
    %1199 = vdwg.mxu0
    %v1200 = vadd.f32 %v1194, %v846
    %v1201 = vadd.f32 %v1197, %v847
    %v1202 = vsel %vm250, %v1200, 0.0
    %1203 = vadd.xlane.f32.xlu0 %v1202
    %v1204 = vpop.xlane.xlu0 %1203
    %v1205 = vsel %vm250, %v1201, 0.0
    %1206 = vadd.xlane.f32.xlu0 %v1205
    %v1207 = vpop.xlane.xlu0 %1206
    %v1208 = vmul.f32 %v1204, %v566
    %v1209 = vmul.f32 %v1207, %v566
    %v1210 = vsub.f32 %v1200, %v1208
    %v1211 = vsub.f32 %v1201, %v1209
    %v1212 = vmul.f32 %v1210, %v1210
    %v1213 = vmul.f32 %v1211, %v1211
    %v1214 = vsel %vm250, %v1212, 0.0
    %1215 = vadd.xlane.f32.xlu0 %v1214
    %v1216 = vpop.xlane.xlu0 %1215
    %v1217 = vsel %vm250, %v1213, 0.0
    %1218 = vadd.xlane.f32.xlu0 %v1217
    %v1219 = vpop.xlane.xlu0 %1218
    %v1220 = vmul.f32 %v1216, %v566
    %v1221 = vmul.f32 %v1219, %v566
    %v1222 = vadd.f32 %v1220, 1e-05
    %v1223 = vadd.f32 %v1221, 1e-05
    %v1224 = vrsqrt.pop %v1222
    %v1225 = vrsqrt.pop %v1223
    %v1226 = vmul.f32 %v1210, %v1224
    %v1227 = vmul.f32 %v1211, %v1225
    %v1228 = vlaneseq
    %v1229 = vshrl.u32 %v1228, 7
    %v1230 = vsub.s32 2, %v1229
    %v1231 = vrot.slane %v204, %v1230
    %v1232 = vmul.f32 %v1226, %v1231
    %v1233 = vmul.f32 %v1227, %v1231
    %v1234 = vlaneseq
    %v1235 = vshrl.u32 %v1234, 7
    %v1236 = vsub.s32 3, %v1235
    %v1237 = vrot.slane %v204, %v1236
    %v1238 = vadd.f32 %v1232, %v1237
    %v1239 = vadd.f32 %v1233, %v1237
    %v1241 = vrot.slane %v1239, 7
    %v1244 = vrot.slane %v1238, 7
    %v1245 = vsel %vm603, %v1244, %v1241
    %v1248 = vsel %vm603, %v1241, %v1244
    %v1249 = vsel %vm611, %v1248, 0.0
    %v1250 = vsel %vm612, %v1245, 0.0
    %v1251 = vrot.slane %v1238, 1
    %v1252 = vrot.slane %v1239, 1
    %v1253 = vsel %vm615, %v1251, %v1252
    %v1257 = vsel %vm615, %v1252, %v1251
    %v1258 = vsel %vm625, %v1253, 0.0
    %v1259 = vsel %vm626, %v1257, 0.0
    %1260 = vrot.lane.b32.xlu0 %v1238, 32
    %v1261 = vpop.permute.xlu0 %1260
    %1262 = vrot.lane.b32.xlu0 %v1239, 32
    %v1263 = vpop.permute.xlu0 %1262
    %1268 = vrot.lane.b32.xlu0 %v1258, 64
    %v1269 = vpop.permute.xlu0 %1268
    %1270 = vrot.lane.b32.xlu0 %v1259, 64
    %v1271 = vpop.permute.xlu0 %1270
    %v1274 = vsel %vm250, %v1249, %v1261
    %v1275 = vsel %vm250, %v1250, %v1263
    %v1276 = vsel %vm94, %v1274, %v1269
    %v1277 = vsel %vm94, %v1275, %v1271
    %v1278 = vpack.c.bf16 %v1277, %v1276
    %v1279 = vlaneseq
    %v1280 = vshrl.u32 %v1279, 7
    %v1281 = vsub.s32 4, %v1280
    %v1282 = vrot.slane %v204, %v1281
    %v1295 = vunpack.c.l.b16 %v856
    %v1296 = vunpack.c.l.b16 %v857
    %v1297 = vunpack.c.l.b16 %v858
    %v1298 = vunpack.c.l.b16 %v859
    %v1299 = vunpack.c.l.b16 %v860
    %v1300 = vunpack.c.l.b16 %v861
    %v1301 = vunpack.c.l.b16 %v862
    %v1302 = vunpack.c.l.b16 %v863
    %v1303 = vunpack.c.l.b16 %v864
    %v1304 = vunpack.c.l.b16 %v865
    %v1305 = vunpack.c.l.b16 %v866
    %v1306 = vunpack.c.l.b16 %v867
    %v1307 = vpack.c.b16 %v1296, %v1295
    %v1308 = vpack.c.b16 %v1298, %v1297
    %v1309 = vpack.c.b16 %v1300, %v1299
    %v1310 = vpack.c.b16 %v1302, %v1301
    %v1311 = vpack.c.b16 %v1304, %v1303
    %v1312 = vpack.c.b16 %v1306, %v1305
    %v1320 = vsel %vm688, %v1278, 0
    %1322 = vmatprep.subr.bf16.mxu0 0
    %1323 = vmatpush1.bf16.msra.mxu0 %v1307
    %1324 = vmatprep.subr.bf16.mxu0 0
    %1325 = vmatpush1.bf16.msra.mxu0 %v1308
    %1326 = vmatprep.subr.bf16.mxu0 0
    %1327 = vmatpush1.bf16.msra.mxu0 %v1309
    %1328 = vmatprep.subr.bf16.mxu0 0
    %1329 = vmatpush1.bf16.msra.mxu0 %v1310
    %1330 = vmatprep.subr.bf16.mxu0 0
    %1331 = vmatpush1.bf16.msra.mxu0 %v1311
    %1332 = vmatprep.subr.bf16.mxu0 0
    %1333 = vmatpush1.bf16.msra.mxu0 %v1312
    %1334 = vmatprep.subr.bf16.mxu0 0
    %1335 = vmatpush1.bf16.msra.mxu0 0
    %1336 = vmatprep.subr.bf16.mxu0 0
    %1337 = vmatpush1.bf16.msra.mxu0 0
    %1338 = vmatprep.subr.bf16.mxu0 0
    %1339 = vmatpush1.bf16.msra.mxu0 0
    %1340 = vmatprep.subr.bf16.mxu0 0
    %1341 = vmatpush1.bf16.msra.mxu0 0
    %1342 = vmatprep.subr.bf16.mxu0 0
    %1343 = vmatpush1.bf16.msra.mxu0 0
    %1344 = vmatprep.subr.bf16.mxu0 0
    %1345 = vmatpush1.bf16.msra.mxu0 0
    %1346 = vmatprep.subr.bf16.mxu0 0
    %1347 = vmatpush1.bf16.msra.mxu0 0
    %1348 = vmatprep.subr.bf16.mxu0 0
    %1349 = vmatpush1.bf16.msra.mxu0 0
    %1350 = vmatprep.subr.bf16.mxu0 0
    %1351 = vmatpush1.bf16.msra.mxu0 0
    %1352 = vmatprep.subr.bf16.mxu0 0
    %1353 = vmatpush1.bf16.msra.mxu0 0
    %1354 = vmatprep.mubr.bf16.mxu0 0
    %1355 = vmatmul.mubr.bf16.gmra.mrb[0].mxu0 %v1320
    %v1356 = vpop.f32.mrb[0].mxu0
    %v1357 = vadd.f32 %v1282, %v1356
    %v1358 = vpop.f32.mrb[0].mxu0
    %v1359 = vpop.f32.mrb[0].mxu0
    %v1360 = vadd.f32 %v1282, %v1359
    %v1361 = vpop.f32.mrb[0].mxu0
    %1362 = vdwg.mxu0
    %v1363 = vmax.f32 %v1357, 0.0
    %v1364 = vmax.f32 %v1360, 0.0
    %v1365 = vpack.c.bf16 %v1364, %v1363
    %v1366 = vlaneseq
    %v1367 = vshrl.u32 %v1366, 7
    %v1368 = vsub.s32 5, %v1367
    %v1369 = vrot.slane %v204, %v1368
    %v1378 = vunpack.c.l.b16 %v868
    %v1379 = vunpack.c.l.b16 %v869
    %v1380 = vunpack.c.l.b16 %v870
    %v1381 = vunpack.c.l.b16 %v871
    %v1382 = vunpack.c.l.b16 %v872
    %v1383 = vunpack.c.l.b16 %v873
    %v1384 = vunpack.c.l.b16 %v874
    %v1385 = vunpack.c.l.b16 %v875
    %v1386 = vpack.c.b16 %v1379, %v1378
    %v1387 = vpack.c.b16 %v1381, %v1380
    %v1388 = vpack.c.b16 %v1383, %v1382
    %v1389 = vpack.c.b16 %v1385, %v1384
    %v1395 = vsel %vm94, %v1365, 0
    %1397 = vmatprep.subr.bf16.mxu0 0
    %1398 = vmatpush1.bf16.msra.mxu0 %v1386
    %1399 = vmatprep.subr.bf16.mxu0 0
    %1400 = vmatpush1.bf16.msra.mxu0 %v1387
    %1401 = vmatprep.subr.bf16.mxu0 0
    %1402 = vmatpush1.bf16.msra.mxu0 %v1388
    %1403 = vmatprep.subr.bf16.mxu0 0
    %1404 = vmatpush1.bf16.msra.mxu0 %v1389
    %1405 = vmatprep.subr.bf16.mxu0 0
    %1406 = vmatpush1.bf16.msra.mxu0 0
    %1407 = vmatprep.subr.bf16.mxu0 0
    %1408 = vmatpush1.bf16.msra.mxu0 0
    %1409 = vmatprep.subr.bf16.mxu0 0
    %1410 = vmatpush1.bf16.msra.mxu0 0
    %1411 = vmatprep.subr.bf16.mxu0 0
    %1412 = vmatpush1.bf16.msra.mxu0 0
    %1413 = vmatprep.subr.bf16.mxu0 0
    %1414 = vmatpush1.bf16.msra.mxu0 0
    %1415 = vmatprep.subr.bf16.mxu0 0
    %1416 = vmatpush1.bf16.msra.mxu0 0
    %1417 = vmatprep.subr.bf16.mxu0 0
    %1418 = vmatpush1.bf16.msra.mxu0 0
    %1419 = vmatprep.subr.bf16.mxu0 0
    %1420 = vmatpush1.bf16.msra.mxu0 0
    %1421 = vmatprep.subr.bf16.mxu0 0
    %1422 = vmatpush1.bf16.msra.mxu0 0
    %1423 = vmatprep.subr.bf16.mxu0 0
    %1424 = vmatpush1.bf16.msra.mxu0 0
    %1425 = vmatprep.subr.bf16.mxu0 0
    %1426 = vmatpush1.bf16.msra.mxu0 0
    %1427 = vmatprep.subr.bf16.mxu0 0
    %1428 = vmatpush1.bf16.msra.mxu0 0
    %1429 = vmatprep.mubr.bf16.mxu0 0
    %1430 = vmatmul.mubr.bf16.gmra.mrb[0].mxu0 %v1395
    %v1431 = vpop.f32.mrb[0].mxu0
    %v1432 = vadd.f32 %v1369, %v1431
    %v1433 = vpop.f32.mrb[0].mxu0
    %v1434 = vpop.f32.mrb[0].mxu0
    %v1435 = vadd.f32 %v1369, %v1434
    %v1436 = vpop.f32.mrb[0].mxu0
    %1437 = vdwg.mxu0
    %v1438 = vadd.f32 %v1432, %v1238
    %v1439 = vadd.f32 %v1435, %v1239
    %v1440 = vsel %vm250, %v1438, 0.0
    %1441 = vadd.xlane.f32.xlu0 %v1440
    %v1442 = vpop.xlane.xlu0 %1441
    %v1443 = vsel %vm250, %v1439, 0.0
    %1444 = vadd.xlane.f32.xlu0 %v1443
    %v1445 = vpop.xlane.xlu0 %1444
    %v1446 = vmul.f32 %v1442, %v566
    %v1447 = vmul.f32 %v1445, %v566
    %v1448 = vsub.f32 %v1438, %v1446
    %v1449 = vsub.f32 %v1439, %v1447
    %v1450 = vmul.f32 %v1448, %v1448
    %v1451 = vmul.f32 %v1449, %v1449
    %v1452 = vsel %vm250, %v1450, 0.0
    %1453 = vadd.xlane.f32.xlu0 %v1452
    %v1454 = vpop.xlane.xlu0 %1453
    %v1455 = vsel %vm250, %v1451, 0.0
    %1456 = vadd.xlane.f32.xlu0 %v1455
    %v1457 = vpop.xlane.xlu0 %1456
    %v1458 = vmul.f32 %v1454, %v566
    %v1459 = vmul.f32 %v1457, %v566
    %v1460 = vadd.f32 %v1458, 1e-05
    %v1461 = vadd.f32 %v1459, 1e-05
    %v1462 = vrsqrt.pop %v1460
    %v1463 = vrsqrt.pop %v1461
    %v1464 = vmul.f32 %v1448, %v1462
    %v1465 = vmul.f32 %v1449, %v1463
    %v1466 = vlaneseq
    %v1467 = vshrl.u32 %v1466, 7
    %v1468 = vsub.s32 6, %v1467
    %v1469 = vrot.slane %v204, %v1468
    %v1470 = vmul.f32 %v1464, %v1469
    %v1471 = vmul.f32 %v1465, %v1469
    %v1472 = vlaneseq
    %v1473 = vshrl.u32 %v1472, 7
    %v1474 = vsub.s32 7, %v1473
    %v1475 = vrot.slane %v204, %v1474
    %v1476 = vadd.f32 %v1470, %v1475
    %v1477 = vadd.f32 %v1471, %v1475
    %1478 = vst.msk [vmem:[#allocation5] sm:$0xff] %vm250, %v1476
    %1479 = vst.msk [vmem:[#allocation5 + $0x8] sm:$0xff] %vm250, %v1477
    // Predicated region
    $region22: #{tpu_custom_call.1} parent=1 // pred_check
      _
    $region23: #{tpu_custom_call.1} parent=1 // pred_check_branch
      %1481 = sbr.rel (0) target = $region25
    $region24: #{tpu_custom_call.1} parent=1 // pred_region
      %s1483 = ssub.s32 256, 256
      %1484 = vsyncadd [#allocation4], %s1483
      %s1485 = sshll.u32 [#allocation5], 4
      %s1486 = int_to_ptr.vmem [resolvable:$true] %s1485
      %1491 = dma.vmem_to_hbm [thread:$0]  %s1486, 256, %s4, [#allocation4], 128, 128, 8
    $region25: #{tpu_custom_call.1} parent=1 // pred_fallthru
      _
    // Predicated region
    $region26: #{tpu_custom_call.1} parent=1 // pred_check
      _
    $region27: #{tpu_custom_call.1} parent=1 // pred_check_branch
      %1493 = sbr.rel (0) target = $region29
    $region28: #{tpu_custom_call.1} parent=1 // pred_region
      %1494 = dma.done [#allocation4], 256
    $region29: #{tpu_custom_call.1} parent=1 // pred_fallthru
      _
    %1495 = vsyncpa [#allocation3], 1
    %1496 = vsyncpa [#allocation4], 1

</llo_original>
